<compile_context>
chip_gen: v5e
topology: v5e:2x2
jax: 0.10.0
libtpu: 0.0.40
codegen_flags: <defaults>
</compile_context>

<pallas_src>
import functools
import math

import jax
import jax.numpy as jnp
from jax.experimental import pallas as pl
from jax.experimental.pallas import tpu as pltpu

CURV = 1.0                      # Poincare ball curvature c
SQRT_C = CURV ** 0.5
MIN_NORM = 1e-15
MIN_NORM_SQ = MIN_NORM * MIN_NORM
PROJ_EPS = 4e-3                 # float32 ball-boundary epsilon (HGCN convention)
ATANH_CLAMP = 1e-5              # f32-safe clamp (1e-7 is below f32 ulp near 1.0)
# Tangent-space radius corresponding to proj()'s ball clip: artanh(1 - PROJ_EPS)/sqrt_c.
TAN_CLIP = 0.5 * math.log((2.0 - PROJ_EPS) / PROJ_EPS)
FPAD = 128                      # lane-dense feature padding


# ------------------------------- fused Pallas kernel -------------------------------
def _graph_encoder_kernel(x_ref, adj_ref, w_ref, o_ref, *, num_layers):
    sqrt_c = jnp.float32(SQRT_C)
    inv_sqrt_c = jnp.float32(1.0 / SQRT_C)
    radial_max = jnp.float32(1.0 - PROJ_EPS)
    atanh_max = jnp.float32(1.0 - ATANH_CLAMP)
    tan_clip = jnp.float32(TAN_CLIP)

    mxu_dtype = w_ref.dtype       # bf16 (default) or f32; radial path always f32
    adj = adj_ref[...]            # (N, N) sym-normalized dense adjacency
    h = x_ref[...]                # (N, FPAD) f32 ball points, zero-padded lanes

    # TODO(synk): convert this static unroll into a grid axis (stacked weights +
    # h carried in VMEM scratch) if num_layers grows beyond ~4.
    for li in range(num_layers):
        wt = w_ref[li]            # (FPAD, FPAD) padded W^T (pre-transposed on host)

        # HypLinear (mobius_matvec, no bias) + proj + logmap0, collapsed:
        #   u = artanh(sqrt_c|h|)/(sqrt_c|h|) * (h @ W^T), with proj()'s ball clip
        #   emulated exactly as a tangent-norm clamp at TAN_CLIP/sqrt_c.
        ss_h = jnp.maximum(jnp.sum(h * h, axis=-1, keepdims=True), MIN_NORM_SQ)
        inv_h = jax.lax.rsqrt(ss_h)                               # 1 / max(|h|, MIN_NORM)
        r = jnp.minimum(sqrt_c * (ss_h * inv_h), atanh_max)       # sqrt_c * |h|
        artanh_r = 0.5 * (jnp.log(1.0 + r) - jnp.log(1.0 - r))    # HGCN artanh, no divide
        mx = jnp.dot(h.astype(mxu_dtype), wt,
                     preferred_element_type=jnp.float32)          # MXU
        ss_mx = jnp.maximum(jnp.sum(mx * mx, axis=-1, keepdims=True), MIN_NORM_SQ)
        inv_mx = jax.lax.rsqrt(ss_mx)
        scale = jnp.minimum(artanh_r * inv_h, tan_clip * inv_mx)  # proj clip in tangent
        u = (scale * inv_sqrt_c) * mx                             # tangent vectors

        # HypAgg (use_att=False): tangent-space neighborhood aggregation on the MXU.
        # TODO(synk): for large N, tile adj over node-row blocks (parallel row axis +
        # arbitrary K axis) and pad N to a multiple of 128; single block is optimal here.
        t = jnp.dot(adj, u.astype(mxu_dtype), preferred_element_type=jnp.float32)

        # HypAct (layers built with nonlin; first layer nonlin=None), roundtrip
        # collapsed: ReLU applied directly in tangent space. The reference's proj()
        # after HypAgg becomes a scale clamp folded into the final expmap0 argument.
        if li > 0:
            ss_t0 = jnp.maximum(jnp.sum(t * t, axis=-1, keepdims=True), MIN_NORM_SQ)
            clipf = jnp.minimum(1.0, (tan_clip * inv_sqrt_c) * jax.lax.rsqrt(ss_t0))
            t = jnp.maximum(t, 0.0)
        else:
            clipf = jnp.float32(1.0)

        # expmap0 + proj fused via the analytic radial coordinate:
        #   g = min(tanh(sqrt_c * clipf * |t|), 1 - PROJ_EPS)
        ss_t = jnp.maximum(jnp.sum(t * t, axis=-1, keepdims=True), MIN_NORM_SQ)
        inv_t = jax.lax.rsqrt(ss_t)
        g = jnp.minimum(jnp.tanh(sqrt_c * clipf * (ss_t * inv_t)), radial_max)
        h = (g * inv_t * inv_sqrt_c) * t

    o_ref[...] = h.astype(o_ref.dtype)


# ------------------------------- host-side glue -------------------------------
def _pad_to(x, rows, cols):
    r, c = x.shape
    return jnp.pad(x, ((0, rows - r), (0, cols - c)))


def build_normalized_adj(edge_index, n):
    """Dense symmetric GCN normalization with self-loops (build once per graph).

    One-hot matmul instead of scatter (scatter lowers poorly on TPU). Multi-edges are
    deduped to weight 1 and self-loops get weight exactly 1; if the original pipeline
    sums multi-edge weights via scatter_add the normalization differs for multigraphs.
    """
    src = jax.nn.one_hot(edge_index[0], n, dtype=jnp.float32)   # (E, N)
    dst = jax.nn.one_hot(edge_index[1], n, dtype=jnp.float32)   # (E, N)
    a = jnp.minimum(jnp.dot(src.T, dst), 1.0)
    a = jnp.maximum(a, a.T)
    a = jnp.where(jnp.eye(n, dtype=bool), 1.0, a)
    dinv = jax.lax.rsqrt(jnp.maximum(jnp.sum(a, axis=-1), 1e-12))
    return a * dinv[:, None] * dinv[None, :]


def graph_encoder_forward(x, adj, weights, *, use_bf16_mxu=True):
    """x: (B, N, in_features) or (N, in_features) Poincare-ball points;
    adj: (B, N, N) or (N, N) sym-normalized dense adjacency (build_normalized_adj);
    weights: list of (dout, din) HypLinear matrices (first layer nonlin=None)."""
    squeeze = x.ndim == 2
    if squeeze:
        x, adj = x[None], adj[None]
    b, n, in_feat = x.shape
    num_layers = len(weights)
    out_dim = weights[-1].shape[0]
    mxu_dtype = jnp.bfloat16 if use_bf16_mxu else jnp.float32

    # Lane-dense layout: zero-pad features to 128 lanes; pre-transpose + pad weights so
    # every in-kernel tensor and the output stores are full-lane / unmasked.
    x_p = jnp.pad(x.astype(jnp.float32), ((0, 0), (0, 0), (0, FPAD - in_feat)))
    w_stack = jnp.stack(
        [_pad_to(w.astype(jnp.float32).T, FPAD, FPAD) for w in weights]
    ).astype(mxu_dtype)                                          # (L, FPAD, FPAD)
    adj_in = adj.astype(mxu_dtype)

    kernel = functools.partial(_graph_encoder_kernel, num_layers=num_layers)

    bytes_io = int(x_p.size * 4 + adj_in.size * adj_in.dtype.itemsize
                   + w_stack.size * w_stack.dtype.itemsize + b * n * FPAD * 4)
    cost = pl.CostEstimate(
        flops=int(2 * b * num_layers * (n * FPAD * FPAD + n * n * FPAD)),
        transcendentals=int(4 * b * num_layers * n),
        bytes_accessed=bytes_io,
    )

    # TODO(synk): pipeline_mode=pl.Buffered(1) on the (constant-index) weight spec would
    # drop its unused second buffer; skipped here since the saving is trivial at this size.
    out_pad = pl.pallas_call(
        kernel,
        out_shape=jax.ShapeDtypeStruct((b, n, FPAD), jnp.float32),
        grid=(b,),
        in_specs=[
            pl.BlockSpec((None, n, FPAD), lambda i: (i, 0, 0)),          # x (per graph)
            pl.BlockSpec((None, n, n), lambda i: (i, 0, 0)),             # adj (per graph)
            pl.BlockSpec((num_layers, FPAD, FPAD), lambda i: (0, 0, 0)),  # weights resident
        ],
        out_specs=pl.BlockSpec((None, n, FPAD), lambda i: (i, 0, 0)),
        compiler_params=pltpu.CompilerParams(dimension_semantics=("parallel",)),
        cost_estimate=cost,
    )(x_p, adj_in, w_stack)

    out = out_pad[:, :, :out_dim]
    return out[0] if squeeze else out


# ---------------- plain-JAX reference (original, unfused layer math) ----------------
def _reference_forward(x, adj, weights):
    sqrt_c = jnp.float32(SQRT_C)

    def norm(v):
        return jnp.maximum(jnp.sqrt(jnp.sum(v * v, -1, keepdims=True)), MIN_NORM)

    def artanh(v):
        v = jnp.clip(v, -1.0 + ATANH_CLAMP, 1.0 - ATANH_CLAMP)
        return 0.5 * (jnp.log(1.0 + v) - jnp.log(1.0 - v))

    def proj(p):
        nrm = norm(p)
        maxn = (1.0 - PROJ_EPS) / sqrt_c
        return jnp.where(nrm > maxn, p / nrm * maxn, p)

    def expmap0(u):
        un = norm(u)
        return jnp.tanh(sqrt_c * un) * u / (sqrt_c * un)

    def logmap0(p):
        pn = norm(p)
        return artanh(sqrt_c * pn) * p / (sqrt_c * pn)

    h = x
    for li, w in enumerate(weights):
        xn = norm(h)
        mx = h @ w.T
        mxn = norm(mx)
        res = jnp.tanh(mxn / xn * artanh(sqrt_c * xn)) * mx / (mxn * sqrt_c)
        res = jnp.where(jnp.sum(jnp.abs(mx), -1, keepdims=True) == 0.0, 0.0, res)
        h = proj(res)                                   # HypLinear (no bias)
        h = proj(expmap0(adj @ logmap0(h)))             # HypAgg (no attention)
        if li > 0:                                      # HypAct (tangent ReLU)
            h = proj(expmap0(jax.nn.relu(logmap0(h))))
    return h


if __name__ == "__main__":
    key = jax.random.PRNGKey(0)
    B, N = 4, 64
    in_features, n_hidden, out_dim, n_layers = 32, 32, 16, 3
    E = 256

    k_feat, k_edge, k_w = jax.random.split(key, 3)

    # Hyperbolic node features: expmap0 of small tangent vectors (deterministic).
    tang = 0.1 * jax.random.normal(k_feat, (B, N, in_features), jnp.float32)
    tn = jnp.maximum(jnp.linalg.norm(tang, axis=-1, keepdims=True), MIN_NORM)
    x = jnp.tanh(SQRT_C * tn) * tang / (SQRT_C * tn)

    # Batch of random graphs as edge_index [B, 2, E]; adjacency built once per graph.
    edge_index = jax.random.randint(k_edge, (B, 2, E), 0, N, dtype=jnp.int32)
    adj = jax.vmap(build_normalized_adj, in_axes=(0, None))(edge_index, N)

    # Deterministic xavier-uniform weights for the 3 PoincareGraphConvolution layers.
    dims = [in_features] + [n_hidden] * (n_layers - 1) + [out_dim]
    wkeys = jax.random.split(k_w, n_layers)
    weights = []
    for li in range(n_layers):
        fan_in, fan_out = dims[li], dims[li + 1]
        limit = (6.0 / (fan_in + fan_out)) ** 0.5
        weights.append(
            jax.random.uniform(wkeys[li], (fan_out, fan_in), jnp.float32, -limit, limit)
        )

    # Main (bf16-MXU) path.
    out = graph_encoder_forward(x, adj, weights, use_bf16_mxu=True)
    jax.block_until_ready(out)
    assert out.shape == (B, N, out_dim) and out.dtype == jnp.float32

    # f32-MXU path validates the algebraic fusions / proj-clip emulation strictly.
    out_f32 = graph_encoder_forward(x, adj, weights, use_bf16_mxu=False)
    jax.block_until_ready(out_f32)

    ref = jnp.stack([_reference_forward(x[b], adj[b], weights) for b in range(B)])

    diff_f32 = float(jnp.max(jnp.abs(out_f32 - ref)))
    assert jnp.allclose(out_f32, ref, atol=1e-3, rtol=1e-3), diff_f32
    # bf16 MXU operands (f32 accumulation, f32 radial path) -> bf16-appropriate tolerance.
    diff_bf16 = float(jnp.max(jnp.abs(out - ref)))
    assert jnp.allclose(out, ref, atol=1e-2, rtol=1e-2), diff_bf16

    # TODO(synk): dropout / use_att / use_bias branches are constructed off in this
    # GraphEncoder config (dropout inactive at inference) and are not implemented in-kernel.
    print("KERNEL_OK")
</pallas_src>

<mosaic_0001>
module attributes {stable_mosaic.version = 11 : i64} {
  func.func @_graph_encoder_kernel(%arg0: i32, %arg1: memref<1x64x128xf32, #tpu.memory_space<vmem>>, %arg2: memref<1x64x64xbf16, #tpu.memory_space<vmem>>, %arg3: memref<3x128x128xbf16, #tpu.memory_space<vmem>>, %arg4: memref<1x64x128xf32, #tpu.memory_space<vmem>>) attributes {dimension_semantics = [#tpu.dimension_semantics<parallel>], iteration_bounds = array<i64: 4>, scalar_prefetch = 0 : i64, scratch_operands = 0 : i64, tpu.core_type = #tpu.core_type<tc>, window_params = [{transform_indices = @transform_0, window_bounds = array<i64: 1, 64, 128>}, {transform_indices = @transform_1, window_bounds = array<i64: 1, 64, 64>}, {pipeline_mode = #tpu.pipeline_mode<synchronous>, transform_indices = @transform_2, window_bounds = array<i64: 3, 128, 128>}, {transform_indices = @transform_3, window_bounds = array<i64: 1, 64, 128>}]} {
    %c0 = arith.constant 0 : index
    %c0_0 = arith.constant 0 : index
    %c0_1 = arith.constant 0 : index
    %0 = vector.load %arg2[%c0, %c0_0, %c0_1] : memref<1x64x64xbf16, #tpu.memory_space<vmem>>, vector<1x64x64xbf16>
    %1 = vector.shape_cast %0 : vector<1x64x64xbf16> to vector<64x64xbf16>
    %c0_2 = arith.constant 0 : index
    %c0_3 = arith.constant 0 : index
    %c0_4 = arith.constant 0 : index
    %2 = vector.load %arg1[%c0_2, %c0_3, %c0_4] : memref<1x64x128xf32, #tpu.memory_space<vmem>>, vector<1x64x128xf32>
    %3 = vector.shape_cast %2 : vector<1x64x128xf32> to vector<64x128xf32>
    %c0_5 = arith.constant 0 : index
    %c0_6 = arith.constant 0 : index
    %c0_7 = arith.constant 0 : index
    %4 = vector.load %arg3[%c0_5, %c0_6, %c0_7] : memref<3x128x128xbf16, #tpu.memory_space<vmem>>, vector<1x128x128xbf16>
    %5 = vector.shape_cast %4 : vector<1x128x128xbf16> to vector<128x128xbf16>
    %6 = arith.mulf %3, %3 : vector<64x128xf32>
    %cst = arith.constant dense<0.000000e+00> : vector<64xf32>
    %7 = vector.multi_reduction <add>, %6, %cst [1] : vector<64x128xf32> to vector<64xf32>
    %8 = vector.shape_cast %7 : vector<64xf32> to vector<64x1xf32>
    %cst_8 = arith.constant 1.000000e-30 : f32
    %9 = vector.broadcast %cst_8 : f32 to vector<64x1xf32>
    %10 = arith.maximumf %8, %9 : vector<64x1xf32>
    %11 = math.rsqrt %10 : vector<64x1xf32>
    %12 = arith.mulf %10, %11 : vector<64x1xf32>
    %cst_9 = arith.constant 1.000000e+00 : f32
    %13 = vector.broadcast %cst_9 : f32 to vector<64x1xf32>
    %14 = arith.mulf %13, %12 : vector<64x1xf32>
    %cst_10 = arith.constant 0.999989986 : f32
    %15 = vector.broadcast %cst_10 : f32 to vector<64x1xf32>
    %16 = arith.minimumf %14, %15 : vector<64x1xf32>
    %cst_11 = arith.constant 1.000000e+00 : f32
    %17 = vector.broadcast %cst_11 : f32 to vector<64x1xf32>
    %18 = arith.addf %17, %16 : vector<64x1xf32>
    %19 = math.log %18 : vector<64x1xf32>
    %cst_12 = arith.constant 1.000000e+00 : f32
    %20 = vector.broadcast %cst_12 : f32 to vector<64x1xf32>
    %21 = arith.subf %20, %16 : vector<64x1xf32>
    %22 = math.log %21 : vector<64x1xf32>
    %23 = arith.subf %19, %22 : vector<64x1xf32>
    %cst_13 = arith.constant 5.000000e-01 : f32
    %24 = vector.broadcast %cst_13 : f32 to vector<64x1xf32>
    %25 = arith.mulf %24, %23 : vector<64x1xf32>
    %26 = arith.truncf %3 : vector<64x128xf32> to vector<64x128xbf16>
    %cst_14 = arith.constant dense<0.000000e+00> : vector<64x128xf32>
    %27 = tpu.matmul %26, %5, %cst_14 {dimension_numbers = #tpu.dot_dimension_numbers<[1], [0], [0], [1], [0, 0, 1, 1], [], []>} : vector<64x128xbf16>, vector<128x128xbf16>, vector<64x128xf32> -> vector<64x128xf32>
    %28 = arith.mulf %27, %27 : vector<64x128xf32>
    %cst_15 = arith.constant dense<0.000000e+00> : vector<64xf32>
    %29 = vector.multi_reduction <add>, %28, %cst_15 [1] : vector<64x128xf32> to vector<64xf32>
    %30 = vector.shape_cast %29 : vector<64xf32> to vector<64x1xf32>
    %cst_16 = arith.constant 1.000000e-30 : f32
    %31 = vector.broadcast %cst_16 : f32 to vector<64x1xf32>
    %32 = arith.maximumf %30, %31 : vector<64x1xf32>
    %33 = math.rsqrt %32 : vector<64x1xf32>
    %34 = arith.mulf %25, %11 : vector<64x1xf32>
    %cst_17 = arith.constant 3.10630298 : f32
    %35 = vector.broadcast %cst_17 : f32 to vector<64x1xf32>
    %36 = arith.mulf %35, %33 : vector<64x1xf32>
    %37 = arith.minimumf %34, %36 : vector<64x1xf32>
    %cst_18 = arith.constant 1.000000e+00 : f32
    %38 = vector.broadcast %cst_18 : f32 to vector<64x1xf32>
    %39 = arith.mulf %37, %38 : vector<64x1xf32>
    %40 = vector.broadcast %39 : vector<64x1xf32> to vector<64x128xf32>
    %41 = arith.mulf %40, %27 : vector<64x128xf32>
    %42 = arith.truncf %41 : vector<64x128xf32> to vector<64x128xbf16>
    %cst_19 = arith.constant dense<0.000000e+00> : vector<64x128xf32>
    %43 = tpu.matmul %1, %42, %cst_19 {dimension_numbers = #tpu.dot_dimension_numbers<[1], [0], [0], [1], [0, 0, 1, 1], [], []>} : vector<64x64xbf16>, vector<64x128xbf16>, vector<64x128xf32> -> vector<64x128xf32>
    %44 = arith.mulf %43, %43 : vector<64x128xf32>
    %cst_20 = arith.constant dense<0.000000e+00> : vector<64xf32>
    %45 = vector.multi_reduction <add>, %44, %cst_20 [1] : vector<64x128xf32> to vector<64xf32>
    %46 = vector.shape_cast %45 : vector<64xf32> to vector<64x1xf32>
    %cst_21 = arith.constant 1.000000e-30 : f32
    %47 = vector.broadcast %cst_21 : f32 to vector<64x1xf32>
    %48 = arith.maximumf %46, %47 : vector<64x1xf32>
    %49 = math.rsqrt %48 : vector<64x1xf32>
    %cst_22 = arith.constant 1.000000e+00 : f32
    %cst_23 = arith.constant 1.000000e+00 : f32
    %50 = arith.mulf %cst_22, %cst_23 : f32
    %51 = arith.mulf %48, %49 : vector<64x1xf32>
    %52 = vector.broadcast %50 : f32 to vector<64x1xf32>
    %53 = arith.mulf %52, %51 : vector<64x1xf32>
    %54 = math.tanh %53 : vector<64x1xf32>
    %cst_24 = arith.constant 0.995999991 : f32
    %55 = vector.broadcast %cst_24 : f32 to vector<64x1xf32>
    %56 = arith.minimumf %54, %55 : vector<64x1xf32>
    %57 = arith.mulf %56, %49 : vector<64x1xf32>
    %cst_25 = arith.constant 1.000000e+00 : f32
    %58 = vector.broadcast %cst_25 : f32 to vector<64x1xf32>
    %59 = arith.mulf %57, %58 : vector<64x1xf32>
    %60 = vector.broadcast %59 : vector<64x1xf32> to vector<64x128xf32>
    %61 = arith.mulf %60, %43 : vector<64x128xf32>
    %c1 = arith.constant 1 : index
    %c0_26 = arith.constant 0 : index
    %c0_27 = arith.constant 0 : index
    %62 = vector.load %arg3[%c1, %c0_26, %c0_27] : memref<3x128x128xbf16, #tpu.memory_space<vmem>>, vector<1x128x128xbf16>
    %63 = vector.shape_cast %62 : vector<1x128x128xbf16> to vector<128x128xbf16>
    %64 = arith.mulf %61, %61 : vector<64x128xf32>
    %cst_28 = arith.constant dense<0.000000e+00> : vector<64xf32>
    %65 = vector.multi_reduction <add>, %64, %cst_28 [1] : vector<64x128xf32> to vector<64xf32>
    %66 = vector.shape_cast %65 : vector<64xf32> to vector<64x1xf32>
    %cst_29 = arith.constant 1.000000e-30 : f32
    %67 = vector.broadcast %cst_29 : f32 to vector<64x1xf32>
    %68 = arith.maximumf %66, %67 : vector<64x1xf32>
    %69 = math.rsqrt %68 : vector<64x1xf32>
    %70 = arith.mulf %68, %69 : vector<64x1xf32>
    %cst_30 = arith.constant 1.000000e+00 : f32
    %71 = vector.broadcast %cst_30 : f32 to vector<64x1xf32>
    %72 = arith.mulf %71, %70 : vector<64x1xf32>
    %cst_31 = arith.constant 0.999989986 : f32
    %73 = vector.broadcast %cst_31 : f32 to vector<64x1xf32>
    %74 = arith.minimumf %72, %73 : vector<64x1xf32>
    %cst_32 = arith.constant 1.000000e+00 : f32
    %75 = vector.broadcast %cst_32 : f32 to vector<64x1xf32>
    %76 = arith.addf %75, %74 : vector<64x1xf32>
    %77 = math.log %76 : vector<64x1xf32>
    %cst_33 = arith.constant 1.000000e+00 : f32
    %78 = vector.broadcast %cst_33 : f32 to vector<64x1xf32>
    %79 = arith.subf %78, %74 : vector<64x1xf32>
    %80 = math.log %79 : vector<64x1xf32>
    %81 = arith.subf %77, %80 : vector<64x1xf32>
    %cst_34 = arith.constant 5.000000e-01 : f32
    %82 = vector.broadcast %cst_34 : f32 to vector<64x1xf32>
    %83 = arith.mulf %82, %81 : vector<64x1xf32>
    %84 = arith.truncf %61 : vector<64x128xf32> to vector<64x128xbf16>
    %cst_35 = arith.constant dense<0.000000e+00> : vector<64x128xf32>
    %85 = tpu.matmul %84, %63, %cst_35 {dimension_numbers = #tpu.dot_dimension_numbers<[1], [0], [0], [1], [0, 0, 1, 1], [], []>} : vector<64x128xbf16>, vector<128x128xbf16>, vector<64x128xf32> -> vector<64x128xf32>
    %86 = arith.mulf %85, %85 : vector<64x128xf32>
    %cst_36 = arith.constant dense<0.000000e+00> : vector<64xf32>
    %87 = vector.multi_reduction <add>, %86, %cst_36 [1] : vector<64x128xf32> to vector<64xf32>
    %88 = vector.shape_cast %87 : vector<64xf32> to vector<64x1xf32>
    %cst_37 = arith.constant 1.000000e-30 : f32
    %89 = vector.broadcast %cst_37 : f32 to vector<64x1xf32>
    %90 = arith.maximumf %88, %89 : vector<64x1xf32>
    %91 = math.rsqrt %90 : vector<64x1xf32>
    %92 = arith.mulf %83, %69 : vector<64x1xf32>
    %cst_38 = arith.constant 3.10630298 : f32
    %93 = vector.broadcast %cst_38 : f32 to vector<64x1xf32>
    %94 = arith.mulf %93, %91 : vector<64x1xf32>
    %95 = arith.minimumf %92, %94 : vector<64x1xf32>
    %cst_39 = arith.constant 1.000000e+00 : f32
    %96 = vector.broadcast %cst_39 : f32 to vector<64x1xf32>
    %97 = arith.mulf %95, %96 : vector<64x1xf32>
    %98 = vector.broadcast %97 : vector<64x1xf32> to vector<64x128xf32>
    %99 = arith.mulf %98, %85 : vector<64x128xf32>
    %100 = arith.truncf %99 : vector<64x128xf32> to vector<64x128xbf16>
    %cst_40 = arith.constant dense<0.000000e+00> : vector<64x128xf32>
    %101 = tpu.matmul %1, %100, %cst_40 {dimension_numbers = #tpu.dot_dimension_numbers<[1], [0], [0], [1], [0, 0, 1, 1], [], []>} : vector<64x64xbf16>, vector<64x128xbf16>, vector<64x128xf32> -> vector<64x128xf32>
    %102 = arith.mulf %101, %101 : vector<64x128xf32>
    %cst_41 = arith.constant dense<0.000000e+00> : vector<64xf32>
    %103 = vector.multi_reduction <add>, %102, %cst_41 [1] : vector<64x128xf32> to vector<64xf32>
    %104 = vector.shape_cast %103 : vector<64xf32> to vector<64x1xf32>
    %cst_42 = arith.constant 1.000000e-30 : f32
    %105 = vector.broadcast %cst_42 : f32 to vector<64x1xf32>
    %106 = arith.maximumf %104, %105 : vector<64x1xf32>
    %cst_43 = arith.constant 3.10630298 : f32
    %cst_44 = arith.constant 1.000000e+00 : f32
    %107 = arith.mulf %cst_43, %cst_44 : f32
    %108 = math.rsqrt %106 : vector<64x1xf32>
    %109 = vector.broadcast %107 : f32 to vector<64x1xf32>
    %110 = arith.mulf %109, %108 : vector<64x1xf32>
    %cst_45 = arith.constant 1.000000e+00 : f32
    %111 = vector.broadcast %cst_45 : f32 to vector<64x1xf32>
    %112 = arith.minimumf %111, %110 : vector<64x1xf32>
    %cst_46 = arith.constant 0.000000e+00 : f32
    %113 = vector.broadcast %cst_46 : f32 to vector<64x128xf32>
    %114 = arith.maximumf %101, %113 : vector<64x128xf32>
    %115 = arith.mulf %114, %114 : vector<64x128xf32>
    %cst_47 = arith.constant dense<0.000000e+00> : vector<64xf32>
    %116 = vector.multi_reduction <add>, %115, %cst_47 [1] : vector<64x128xf32> to vector<64xf32>
    %117 = vector.shape_cast %116 : vector<64xf32> to vector<64x1xf32>
    %cst_48 = arith.constant 1.000000e-30 : f32
    %118 = vector.broadcast %cst_48 : f32 to vector<64x1xf32>
    %119 = arith.maximumf %117, %118 : vector<64x1xf32>
    %120 = math.rsqrt %119 : vector<64x1xf32>
    %cst_49 = arith.constant 1.000000e+00 : f32
    %121 = vector.broadcast %cst_49 : f32 to vector<64x1xf32>
    %122 = arith.mulf %121, %112 : vector<64x1xf32>
    %123 = arith.mulf %119, %120 : vector<64x1xf32>
    %124 = arith.mulf %122, %123 : vector<64x1xf32>
    %125 = math.tanh %124 : vector<64x1xf32>
    %cst_50 = arith.constant 0.995999991 : f32
    %126 = vector.broadcast %cst_50 : f32 to vector<64x1xf32>
    %127 = arith.minimumf %125, %126 : vector<64x1xf32>
    %128 = arith.mulf %127, %120 : vector<64x1xf32>
    %cst_51 = arith.constant 1.000000e+00 : f32
    %129 = vector.broadcast %cst_51 : f32 to vector<64x1xf32>
    %130 = arith.mulf %128, %129 : vector<64x1xf32>
    %131 = vector.broadcast %130 : vector<64x1xf32> to vector<64x128xf32>
    %132 = arith.mulf %131, %114 : vector<64x128xf32>
    %c2 = arith.constant 2 : index
    %c0_52 = arith.constant 0 : index
    %c0_53 = arith.constant 0 : index
    %133 = vector.load %arg3[%c2, %c0_52, %c0_53] : memref<3x128x128xbf16, #tpu.memory_space<vmem>>, vector<1x128x128xbf16>
    %134 = vector.shape_cast %133 : vector<1x128x128xbf16> to vector<128x128xbf16>
    %135 = arith.mulf %132, %132 : vector<64x128xf32>
    %cst_54 = arith.constant dense<0.000000e+00> : vector<64xf32>
    %136 = vector.multi_reduction <add>, %135, %cst_54 [1] : vector<64x128xf32> to vector<64xf32>
    %137 = vector.shape_cast %136 : vector<64xf32> to vector<64x1xf32>
    %cst_55 = arith.constant 1.000000e-30 : f32
    %138 = vector.broadcast %cst_55 : f32 to vector<64x1xf32>
    %139 = arith.maximumf %137, %138 : vector<64x1xf32>
    %140 = math.rsqrt %139 : vector<64x1xf32>
    %141 = arith.mulf %139, %140 : vector<64x1xf32>
    %cst_56 = arith.constant 1.000000e+00 : f32
    %142 = vector.broadcast %cst_56 : f32 to vector<64x1xf32>
    %143 = arith.mulf %142, %141 : vector<64x1xf32>
    %cst_57 = arith.constant 0.999989986 : f32
    %144 = vector.broadcast %cst_57 : f32 to vector<64x1xf32>
    %145 = arith.minimumf %143, %144 : vector<64x1xf32>
    %cst_58 = arith.constant 1.000000e+00 : f32
    %146 = vector.broadcast %cst_58 : f32 to vector<64x1xf32>
    %147 = arith.addf %146, %145 : vector<64x1xf32>
    %148 = math.log %147 : vector<64x1xf32>
    %cst_59 = arith.constant 1.000000e+00 : f32
    %149 = vector.broadcast %cst_59 : f32 to vector<64x1xf32>
    %150 = arith.subf %149, %145 : vector<64x1xf32>
    %151 = math.log %150 : vector<64x1xf32>
    %152 = arith.subf %148, %151 : vector<64x1xf32>
    %cst_60 = arith.constant 5.000000e-01 : f32
    %153 = vector.broadcast %cst_60 : f32 to vector<64x1xf32>
    %154 = arith.mulf %153, %152 : vector<64x1xf32>
    %155 = arith.truncf %132 : vector<64x128xf32> to vector<64x128xbf16>
    %cst_61 = arith.constant dense<0.000000e+00> : vector<64x128xf32>
    %156 = tpu.matmul %155, %134, %cst_61 {dimension_numbers = #tpu.dot_dimension_numbers<[1], [0], [0], [1], [0, 0, 1, 1], [], []>} : vector<64x128xbf16>, vector<128x128xbf16>, vector<64x128xf32> -> vector<64x128xf32>
    %157 = arith.mulf %156, %156 : vector<64x128xf32>
    %cst_62 = arith.constant dense<0.000000e+00> : vector<64xf32>
    %158 = vector.multi_reduction <add>, %157, %cst_62 [1] : vector<64x128xf32> to vector<64xf32>
    %159 = vector.shape_cast %158 : vector<64xf32> to vector<64x1xf32>
    %cst_63 = arith.constant 1.000000e-30 : f32
    %160 = vector.broadcast %cst_63 : f32 to vector<64x1xf32>
    %161 = arith.maximumf %159, %160 : vector<64x1xf32>
    %162 = math.rsqrt %161 : vector<64x1xf32>
    %163 = arith.mulf %154, %140 : vector<64x1xf32>
    %cst_64 = arith.constant 3.10630298 : f32
    %164 = vector.broadcast %cst_64 : f32 to vector<64x1xf32>
    %165 = arith.mulf %164, %162 : vector<64x1xf32>
    %166 = arith.minimumf %163, %165 : vector<64x1xf32>
    %cst_65 = arith.constant 1.000000e+00 : f32
    %167 = vector.broadcast %cst_65 : f32 to vector<64x1xf32>
    %168 = arith.mulf %166, %167 : vector<64x1xf32>
    %169 = vector.broadcast %168 : vector<64x1xf32> to vector<64x128xf32>
    %170 = arith.mulf %169, %156 : vector<64x128xf32>
    %171 = arith.truncf %170 : vector<64x128xf32> to vector<64x128xbf16>
    %cst_66 = arith.constant dense<0.000000e+00> : vector<64x128xf32>
    %172 = tpu.matmul %1, %171, %cst_66 {dimension_numbers = #tpu.dot_dimension_numbers<[1], [0], [0], [1], [0, 0, 1, 1], [], []>} : vector<64x64xbf16>, vector<64x128xbf16>, vector<64x128xf32> -> vector<64x128xf32>
    %173 = arith.mulf %172, %172 : vector<64x128xf32>
    %cst_67 = arith.constant dense<0.000000e+00> : vector<64xf32>
    %174 = vector.multi_reduction <add>, %173, %cst_67 [1] : vector<64x128xf32> to vector<64xf32>
    %175 = vector.shape_cast %174 : vector<64xf32> to vector<64x1xf32>
    %cst_68 = arith.constant 1.000000e-30 : f32
    %176 = vector.broadcast %cst_68 : f32 to vector<64x1xf32>
    %177 = arith.maximumf %175, %176 : vector<64x1xf32>
    %cst_69 = arith.constant 3.10630298 : f32
    %cst_70 = arith.constant 1.000000e+00 : f32
    %178 = arith.mulf %cst_69, %cst_70 : f32
    %179 = math.rsqrt %177 : vector<64x1xf32>
    %180 = vector.broadcast %178 : f32 to vector<64x1xf32>
    %181 = arith.mulf %180, %179 : vector<64x1xf32>
    %cst_71 = arith.constant 1.000000e+00 : f32
    %182 = vector.broadcast %cst_71 : f32 to vector<64x1xf32>
    %183 = arith.minimumf %182, %181 : vector<64x1xf32>
    %cst_72 = arith.constant 0.000000e+00 : f32
    %184 = vector.broadcast %cst_72 : f32 to vector<64x128xf32>
    %185 = arith.maximumf %172, %184 : vector<64x128xf32>
    %186 = arith.mulf %185, %185 : vector<64x128xf32>
    %cst_73 = arith.constant dense<0.000000e+00> : vector<64xf32>
    %187 = vector.multi_reduction <add>, %186, %cst_73 [1] : vector<64x128xf32> to vector<64xf32>
    %188 = vector.shape_cast %187 : vector<64xf32> to vector<64x1xf32>
    %cst_74 = arith.constant 1.000000e-30 : f32
    %189 = vector.broadcast %cst_74 : f32 to vector<64x1xf32>
    %190 = arith.maximumf %188, %189 : vector<64x1xf32>
    %191 = math.rsqrt %190 : vector<64x1xf32>
    %cst_75 = arith.constant 1.000000e+00 : f32
    %192 = vector.broadcast %cst_75 : f32 to vector<64x1xf32>
    %193 = arith.mulf %192, %183 : vector<64x1xf32>
    %194 = arith.mulf %190, %191 : vector<64x1xf32>
    %195 = arith.mulf %193, %194 : vector<64x1xf32>
    %196 = math.tanh %195 : vector<64x1xf32>
    %cst_76 = arith.constant 0.995999991 : f32
    %197 = vector.broadcast %cst_76 : f32 to vector<64x1xf32>
    %198 = arith.minimumf %196, %197 : vector<64x1xf32>
    %199 = arith.mulf %198, %191 : vector<64x1xf32>
    %cst_77 = arith.constant 1.000000e+00 : f32
    %200 = vector.broadcast %cst_77 : f32 to vector<64x1xf32>
    %201 = arith.mulf %199, %200 : vector<64x1xf32>
    %202 = vector.broadcast %201 : vector<64x1xf32> to vector<64x128xf32>
    %203 = arith.mulf %202, %185 : vector<64x128xf32>
    %c0_78 = arith.constant 0 : index
    %c0_79 = arith.constant 0 : index
    %c0_80 = arith.constant 0 : index
    %204 = vector.load %arg4[%c0_78, %c0_79, %c0_80] : memref<1x64x128xf32, #tpu.memory_space<vmem>>, vector<1x64x128xf32>
    %205 = vector.shape_cast %204 : vector<1x64x128xf32> to vector<64x128xf32>
    %206 = vector.shape_cast %203 : vector<64x128xf32> to vector<1x64x128xf32>
    tpu.vector_store %arg4[%c0_78, %c0_79, %c0_80], %206 {strides = array<i32>} : memref<1x64x128xf32, #tpu.memory_space<vmem>>, vector<1x64x128xf32>,
    return
  }
  func.func @transform_0(%arg0: i32) -> (i32, i32, i32) {
    %c0_i32 = arith.constant 0 : i32
    %c0_i32_0 = arith.constant 0 : i32
    %c0_i32_1 = arith.constant 0 : i32
    return %arg0, %c0_i32, %c0_i32_0 : i32, i32, i32
  }
  func.func @transform_1(%arg0: i32) -> (i32, i32, i32) {
    %c0_i32 = arith.constant 0 : i32
    %c0_i32_0 = arith.constant 0 : i32
    %c0_i32_1 = arith.constant 0 : i32
    return %arg0, %c0_i32, %c0_i32_0 : i32, i32, i32
  }
  func.func @transform_2(%arg0: i32) -> (i32, i32, i32) {
    %c0_i32 = arith.constant 0 : i32
    %c0_i32_0 = arith.constant 0 : i32
    %c0_i32_1 = arith.constant 0 : i32
    %c0_i32_2 = arith.constant 0 : i32
    return %c0_i32, %c0_i32_0, %c0_i32_1 : i32, i32, i32
  }
  func.func @transform_3(%arg0: i32) -> (i32, i32, i32) {
    %c0_i32 = arith.constant 0 : i32
    %c0_i32_0 = arith.constant 0 : i32
    %c0_i32_1 = arith.constant 0 : i32
    return %arg0, %c0_i32, %c0_i32_0 : i32, i32, i32
  }
}

</mosaic_0001>

<llo_original>
// kernel: tpu_custom_call.1
$region0: #{tpu_custom_call.1}
  #allocation0 [shape = 'u32[]', space=smem, size = 0x4, offset = 0x4, fixed_abs, tag = 'smem constant byte address 0x4 - core index']
  #allocation1 [shape = 'u32[72,128]{1,0:T(1,128)}', space=vmem, size = 0x9000, scoped, tag = 'internal scratch']
  %s0 = inlined_call_operand.hbm [shape: f32[4,64,128], index: 0, kind: input, shape index: {}]
  %s1 = inlined_call_operand.hbm [shape: bf16[4,64,64], index: 1, kind: input, shape index: {}]
  %s2 = inlined_call_operand.hbm [shape: bf16[3,128,128], index: 2, kind: input, shape index: {}]
  %s3 = inlined_call_operand.hbm [shape: f32[4,64,128], index: 3, kind: output, shape index: {}]
  %s4 = sld [smem:[#allocation0]]
  $region57: #{tpu_custom_call.1} parent=0
    _
  %s6 = ssub.s32 1, %s4
  %s7 = scalar_select 0, %s6, %s4
  $region1: #{tpu_custom_call.1} parent=0
    #allocation2 [shape = 'u8[65536]{0}', space=vmem, size = 0x10000, scoped, tag = 'input window, operand 0']
    #allocation3 [shape = 's32[2]{0}', space=sflag, size = 0x8, scoped, tag = 'scoped memory for tpu_custom_call.1']
    #allocation4 [shape = 's32[2]{0}', space=sflag, size = 0x8, scoped, tag = 'scoped memory for tpu_custom_call.1']
    #allocation5 [shape = 'u8[32768]{0}', space=vmem, size = 0x8000, scoped, tag = 'input window, operand 1']
    #allocation6 [shape = 's32[2]{0}', space=sflag, size = 0x8, scoped, tag = 'scoped memory for tpu_custom_call.1']
    #allocation7 [shape = 'u8[98304]{0}', space=vmem, size = 0x18000, scoped, tag = 'input window, operand 2, single buffered']
    #allocation8 [shape = 'u8[65536]{0}', space=vmem, size = 0x10000, scoped, tag = 'output window, operand 0']
    %8 = vsyncpa [#allocation3], 0
    %s9 = scalar_lea.sflag [#allocation3], 1
    %10 = vsyncpa %s9, 0
    %11 = vsyncpa [#allocation6], 0
    %s12 = scalar_lea.sflag [#allocation6], 1
    %13 = vsyncpa %s12, 0
    %14 = vsyncpa [#allocation4], 0
    %s15 = scalar_lea.sflag [#allocation4], 1
    %16 = vsyncpa %s15, 0
    loop: start=0, step=1, limit=6
    $region2: #{tpu_custom_call.1} parent=1 // loop_pre_header
      _
    $region3: #{tpu_custom_call.1} parent=1 // loop_header
      %s18 = sphi 0, %s22
      %p19 = scmp.ge.s32.totalorder %s18, 6
      %s28 = sphi 0, %s30
      %s31 = sphi 0, %s28
      %s32 = sphi 0, %s31
      %s48 = sphi 0, %s32
      %s54 = sphi 0, %s56
      %s57 = sphi 0, %s54
      %s58 = sphi 0, %s57
      %s74 = sphi 0, %s58
      %s78 = sphi 0, %s78
      %s80 = sphi 0, %s78
      %s81 = sphi 0, %s80
      %s95 = sphi 0, %s81
      %s101 = sphi 0, %s103
      %s104 = sphi 0, %s101
      %s105 = sphi 0, %s104
      %s121 = sphi 0, %s105
    $region4: #{tpu_custom_call.1} parent=1 // loop_header_branch
      %21 = sbr.rel (%p19) target = $region8
    $region5: #{tpu_custom_call.1} parent=1 // loop_body
      %s23 = ssub.s32 %s18, 1
      %s24 = ssub.s32 %s18, 2
      %s25 = sadd.s32 %s18, 1
      %s26 = ssub.s32 %s18, %s25
      %p27 = scmp.eq.s32.totalorder %s26, 0
      %s29 = sadd.s32 %s28, 1
      %s30 = scalar_select %p27, %s28, %s29
      %p33 = pneg %p27
      %p34 = scmp.eq.s32.totalorder %s18, 3
      %p35 = por %p33, %p34
      %p36 = scmp.ne.s32.totalorder %s28, %s31
      %p37 = scmp.eq.s32.totalorder %s18, 0
      %p38 = por %p36, %p37
      %p39 = scmp.ne.s32.totalorder %s28, %s31
      %p40 = scmp.eq.s32.totalorder %s23, 3
      %p41 = por %p39, %p40
      %p42 = scmp.ne.s32.totalorder %s31, %s32
      %p43 = scmp.eq.s32.totalorder %s23, 0
      %p44 = por %p42, %p43
      %p45 = scmp.ne.s32.totalorder %s31, %s32
      %p46 = scmp.eq.s32.totalorder %s24, 3
      %p47 = por %p45, %p46
      %p49 = scmp.ne.s32.totalorder %s32, %s48
      %p50 = scmp.eq.s32.totalorder %s24, 0
      %p51 = por %p49, %p50
      %s52 = ssub.s32 %s18, %s25
      %p53 = scmp.eq.s32.totalorder %s52, 0
      %s55 = sadd.s32 %s54, 1
      %s56 = scalar_select %p53, %s54, %s55
      %p59 = pneg %p53
      %p60 = scmp.eq.s32.totalorder %s18, 3
      %p61 = por %p59, %p60
      %p62 = scmp.ne.s32.totalorder %s54, %s57
      %p63 = scmp.eq.s32.totalorder %s18, 0
      %p64 = por %p62, %p63
      %p65 = scmp.ne.s32.totalorder %s54, %s57
      %p66 = scmp.eq.s32.totalorder %s23, 3
      %p67 = por %p65, %p66
      %p68 = scmp.ne.s32.totalorder %s57, %s58
      %p69 = scmp.eq.s32.totalorder %s23, 0
      %p70 = por %p68, %p69
      %p71 = scmp.ne.s32.totalorder %s57, %s58
      %p72 = scmp.eq.s32.totalorder %s24, 3
      %p73 = por %p71, %p72
      %p75 = scmp.ne.s32.totalorder %s58, %s74
      %p76 = scmp.eq.s32.totalorder %s24, 0
      %p77 = por %p75, %p76
      %s79 = sadd.s32 %s78, 1
      %p82 = scmp.eq.s32.totalorder %s18, 3
      %p83 = scmp.ne.s32.totalorder %s78, %s80
      %p84 = scmp.eq.s32.totalorder %s18, 0
      %p85 = por %p83, %p84
      %p86 = scmp.ne.s32.totalorder %s78, %s80
      %p87 = scmp.eq.s32.totalorder %s23, 3
      %p88 = por %p86, %p87
      %p89 = scmp.ne.s32.totalorder %s80, %s81
      %p90 = scmp.eq.s32.totalorder %s23, 0
      %p91 = por %p89, %p90
      %p92 = scmp.ne.s32.totalorder %s80, %s81
      %p93 = scmp.eq.s32.totalorder %s24, 3
      %p94 = por %p92, %p93
      %p96 = scmp.ne.s32.totalorder %s81, %s95
      %p97 = scmp.eq.s32.totalorder %s24, 0
      %p98 = por %p96, %p97
      %s99 = ssub.s32 %s18, %s25
      %p100 = scmp.eq.s32.totalorder %s99, 0
      %s102 = sadd.s32 %s101, 1
      %s103 = scalar_select %p100, %s101, %s102
      %p106 = pneg %p100
      %p107 = scmp.eq.s32.totalorder %s18, 3
      %p108 = por %p106, %p107
      %p109 = scmp.ne.s32.totalorder %s101, %s104
      %p110 = scmp.eq.s32.totalorder %s18, 0
      %p111 = por %p109, %p110
      %p112 = scmp.ne.s32.totalorder %s101, %s104
      %p113 = scmp.eq.s32.totalorder %s23, 3
      %p114 = por %p112, %p113
      %p115 = scmp.ne.s32.totalorder %s104, %s105
      %p116 = scmp.eq.s32.totalorder %s23, 0
      %p117 = por %p115, %p116
      %p118 = scmp.ne.s32.totalorder %s104, %s105
      %p119 = scmp.eq.s32.totalorder %s24, 3
      %p120 = por %p118, %p119
      %p122 = scmp.ne.s32.totalorder %s105, %s121
      %p123 = scmp.eq.s32.totalorder %s24, 0
      %p124 = por %p122, %p123
      %p125 = scmp.le.s32.totalorder 1, %s18
      %p126 = scmp.lt.s32.totalorder %s18, 5
      %p127 = pnand %p125, %p126
      %p128 = pneg %p127
      // Predicated region
      $region9: #{tpu_custom_call.1} parent=5 // pred_check
        _
      $region10: #{tpu_custom_call.1} parent=5 // pred_check_branch
        %130 = sbr.rel (%p127) target = $region12
      $region11: #{tpu_custom_call.1} parent=5 // pred_region
        %s131 = ssub.s32 %s18, 1
        // Predicated region
        $region13: #{tpu_custom_call.1} parent=11 // pred_check
          %p132 = pneg %p91
        $region14: #{tpu_custom_call.1} parent=11 // pred_check_branch
          %134 = sbr.rel (%p132) target = $region16
        $region15: #{tpu_custom_call.1} parent=11 // pred_region
          %136 = vsyncadd [#allocation6], 0
          %s137 = sshll.u32 %s2, 4
          %s138 = int_to_ptr.hbm [resolvable:$true] %s137
          %s139 = sshll.u32 [#allocation7], 4
          %s140 = int_to_ptr.vmem [resolvable:$true] %s139
          %145 = dma.hbm_to_vmem [thread:$0]  %s138, 3072, %s140, [#allocation6], 64, 64, 4
        $region16: #{tpu_custom_call.1} parent=11 // pred_fallthru
          _
      $region12: #{tpu_custom_call.1} parent=5 // pred_fallthru
        _
      %p146 = scmp.lt.s32.totalorder %s18, 4
      // Predicated region
      $region17: #{tpu_custom_call.1} parent=5 // pred_check
        %p147 = pneg %p146
      $region18: #{tpu_custom_call.1} parent=5 // pred_check_branch
        %149 = sbr.rel (%p147) target = $region20
      $region19: #{tpu_custom_call.1} parent=5 // pred_region
        // Predicated region
        $region21: #{tpu_custom_call.1} parent=19 // pred_check
          %p150 = pneg %p38
        $region22: #{tpu_custom_call.1} parent=19 // pred_check_branch
          %152 = sbr.rel (%p150) target = $region24
        $region23: #{tpu_custom_call.1} parent=19 // pred_region
          %s153 = sand.u32 %s28, 1
          %s154 = scalar_lea.sflag [#allocation3], %s153
          %s155 = sand.u32 %s28, 1
          %s156 = smul.addr %s155, 64
          %s157 = scalar_lea.vmem [#allocation2], %s156
          %159 = vsyncadd %s154, 0
          %s160 = smul.addr %s18, 8
          %s161 = smul.addr %s160, 8
          %s162 = scalar_lea.hbm %s0, %s161
          %s163 = sshll.u32 %s162, 4
          %s164 = int_to_ptr.hbm [resolvable:$true] %s163
          %s165 = sshll.u32 %s157, 4
          %s166 = int_to_ptr.vmem [resolvable:$true] %s165
          %171 = dma.hbm_to_vmem [thread:$0]  %s164, 1024, %s166, %s154, 128, 128, 8
        $region24: #{tpu_custom_call.1} parent=19 // pred_fallthru
          _
        // Predicated region
        $region25: #{tpu_custom_call.1} parent=19 // pred_check
          %p172 = pneg %p64
        $region26: #{tpu_custom_call.1} parent=19 // pred_check_branch
          %174 = sbr.rel (%p172) target = $region28
        $region27: #{tpu_custom_call.1} parent=19 // pred_region
          %s175 = sand.u32 %s18, 1
          %s176 = scalar_lea.sflag [#allocation6], %s175
          %s177 = sand.u32 %s54, 1
          %s178 = smul.addr %s177, 32
          %s179 = scalar_lea.vmem [#allocation5], %s178
          %181 = vsyncadd %s176, 0
          %s182 = smul.addr %s18, 8
          %s183 = smul.addr %s182, 4
          %s184 = scalar_lea.hbm %s1, %s183
          %s185 = sshll.u32 %s184, 4
          %s186 = int_to_ptr.hbm [resolvable:$true] %s185
          %s187 = sshll.u32 %s179, 4
          %s188 = int_to_ptr.vmem [resolvable:$true] %s187
          %193 = dma.hbm_to_vmem [thread:$0]  %s186, 512, %s188, %s176, 64, 64, 4
        $region28: #{tpu_custom_call.1} parent=19 // pred_fallthru
          _
      $region20: #{tpu_custom_call.1} parent=5 // pred_fallthru
        _
      %p194 = scmp.le.s32.totalorder 1, %s18
      %p195 = scmp.lt.s32.totalorder %s18, 5
      %p196 = pnand %p194, %p195
      %p197 = pneg %p196
      // Predicated region
      $region29: #{tpu_custom_call.1} parent=5 // pred_check
        _
      $region30: #{tpu_custom_call.1} parent=5 // pred_check_branch
        %199 = sbr.rel (%p196) target = $region32
      $region31: #{tpu_custom_call.1} parent=5 // pred_region
        %s200 = ssub.s32 %s18, 1
        %s201 = sand.u32 %s31, 1
        %s202 = scalar_lea.sflag [#allocation3], %s201
        %s203 = sand.u32 %s31, 1
        %s204 = smul.addr %s203, 64
        %s205 = scalar_lea.vmem [#allocation2], %s204
        // Predicated region
        $region33: #{tpu_custom_call.1} parent=31 // pred_check
          %p206 = pneg %p44
        $region34: #{tpu_custom_call.1} parent=31 // pred_check_branch
          %208 = sbr.rel (%p206) target = $region36
        $region35: #{tpu_custom_call.1} parent=31 // pred_region
          %210 = dma.done %s202, 1024
        $region36: #{tpu_custom_call.1} parent=31 // pred_fallthru
          _
        %s211 = sand.u32 %s23, 1
        %s212 = scalar_lea.sflag [#allocation6], %s211
        %s213 = sand.u32 %s57, 1
        %s214 = smul.addr %s213, 32
        %s215 = scalar_lea.vmem [#allocation5], %s214
        // Predicated region
        $region37: #{tpu_custom_call.1} parent=31 // pred_check
          %p216 = pneg %p70
        $region38: #{tpu_custom_call.1} parent=31 // pred_check_branch
          %218 = sbr.rel (%p216) target = $region40
        $region39: #{tpu_custom_call.1} parent=31 // pred_region
          %220 = dma.done %s212, 512
        $region40: #{tpu_custom_call.1} parent=31 // pred_fallthru
          _
        // Predicated region
        $region41: #{tpu_custom_call.1} parent=31 // pred_check
          %p221 = pneg %p91
        $region42: #{tpu_custom_call.1} parent=31 // pred_check_branch
          %223 = sbr.rel (%p221) target = $region44
        $region43: #{tpu_custom_call.1} parent=31 // pred_region
          %225 = dma.done [#allocation6], 3072
        $region44: #{tpu_custom_call.1} parent=31 // pred_fallthru
          _
        %s226 = sand.u32 %s31, 1
        %s227 = scalar_lea.sflag [#allocation3], %s226
        %s228 = sand.u32 %s31, 1
        %s229 = smul.addr %s228, 64
        %s230 = scalar_lea.vmem [#allocation2], %s229
        %p231 = pneg %p44
        %p232 = pneg %p41
        %s233 = sand.u32 %s23, 1
        %s234 = scalar_lea.sflag [#allocation6], %s233
        %s235 = sand.u32 %s57, 1
        %s236 = smul.addr %s235, 32
        %s237 = scalar_lea.vmem [#allocation5], %s236
        %p238 = pneg %p70
        %p239 = pneg %p67
        %p240 = pneg %p91
        %p241 = pneg %p88
        %p242 = pneg %p117
        %p243 = pneg %p114
        %s244 = sand.u32 %s104, 1
        %s245 = scalar_lea.sflag [#allocation4], %s244
        %s246 = sand.u32 %s104, 1
        %s247 = smul.addr %s246, 64
        %s248 = scalar_lea.vmem [#allocation8], %s247
        %v250 = vld [vmem:[%s215] sm:$0xf]
        %v251 = vld [vmem:[%s215 + $0x4] sm:$0xf]
        %v252 = vld [vmem:[%s215 + $0x8] sm:$0xf]
        %v253 = vld [vmem:[%s215 + $0xc] sm:$0xf]
        %v254 = vld [vmem:[%s215 + $0x10] sm:$0xf]
        %v255 = vld [vmem:[%s215 + $0x14] sm:$0xf]
        %v256 = vld [vmem:[%s215 + $0x18] sm:$0xf]
        %v257 = vld [vmem:[%s215 + $0x1c] sm:$0xf]
        %v258 = vld [vmem:[%s205] sm:$0xff]
        %v259 = vld [vmem:[%s205 + $0x8] sm:$0xff]
        %v260 = vld [vmem:[%s205 + $0x10] sm:$0xff]
        %v261 = vld [vmem:[%s205 + $0x18] sm:$0xff]
        %v262 = vld [vmem:[%s205 + $0x20] sm:$0xff]
        %v263 = vld [vmem:[%s205 + $0x28] sm:$0xff]
        %v264 = vld [vmem:[%s205 + $0x30] sm:$0xff]
        %v265 = vld [vmem:[%s205 + $0x38] sm:$0xff]
        %v266 = vld [vmem:[#allocation7] sm:$0xf]
        %v267 = vld [vmem:[#allocation7 + $0x4] sm:$0xf]
        %v268 = vld [vmem:[#allocation7 + $0x8] sm:$0xf]
        %v269 = vld [vmem:[#allocation7 + $0xc] sm:$0xf]
        %v270 = vld [vmem:[#allocation7 + $0x10] sm:$0xf]
        %v271 = vld [vmem:[#allocation7 + $0x14] sm:$0xf]
        %v272 = vld [vmem:[#allocation7 + $0x18] sm:$0xf]
        %v273 = vld [vmem:[#allocation7 + $0x1c] sm:$0xf]
        %v274 = vld [vmem:[#allocation7 + $0x20] sm:$0xf]
        %v275 = vld [vmem:[#allocation7 + $0x24] sm:$0xf]
        %v276 = vld [vmem:[#allocation7 + $0x28] sm:$0xf]
        %v277 = vld [vmem:[#allocation7 + $0x2c] sm:$0xf]
        %v278 = vld [vmem:[#allocation7 + $0x30] sm:$0xf]
        %v279 = vld [vmem:[#allocation7 + $0x34] sm:$0xf]
        %v280 = vld [vmem:[#allocation7 + $0x38] sm:$0xf]
        %v281 = vld [vmem:[#allocation7 + $0x3c] sm:$0xf]
        %v282 = vmul.f32 %v258, %v258
        %v283 = vmul.f32 %v259, %v259
        %v284 = vmul.f32 %v260, %v260
        %v285 = vmul.f32 %v261, %v261
        %v286 = vmul.f32 %v262, %v262
        %v287 = vmul.f32 %v263, %v263
        %v288 = vmul.f32 %v264, %v264
        %v289 = vmul.f32 %v265, %v265
        %290 = vadd.xlane.f32.xlu0 %v282
        %v291 = vpop.xlane.xlu0 %290
        %292 = vadd.xlane.f32.xlu0 %v283
        %v293 = vpop.xlane.xlu0 %292
        %294 = vadd.xlane.f32.xlu0 %v284
        %v295 = vpop.xlane.xlu0 %294
        %296 = vadd.xlane.f32.xlu0 %v285
        %v297 = vpop.xlane.xlu0 %296
        %298 = vadd.xlane.f32.xlu0 %v286
        %v299 = vpop.xlane.xlu0 %298
        %300 = vadd.xlane.f32.xlu0 %v287
        %v301 = vpop.xlane.xlu0 %300
        %302 = vadd.xlane.f32.xlu0 %v288
        %v303 = vpop.xlane.xlu0 %302
        %304 = vadd.xlane.f32.xlu0 %v289
        %v305 = vpop.xlane.xlu0 %304
        %v306 = vmax.f32 %v291, 1e-30
        %v307 = vmax.f32 %v293, 1e-30
        %v308 = vmax.f32 %v295, 1e-30
        %v309 = vmax.f32 %v297, 1e-30
        %v310 = vmax.f32 %v299, 1e-30
        %v311 = vmax.f32 %v301, 1e-30
        %v312 = vmax.f32 %v303, 1e-30
        %v313 = vmax.f32 %v305, 1e-30
        %v314 = vrsqrt.pop %v306
        %v315 = vmul.f32 %v314, %v306
        %v316 = vmul.f32 %v315, %v314
        %v317 = vmul.f32 0.5, %v316
        %v318 = vsub.f32 1.5, %v317
        %v319 = vmul.f32 %v314, %v318
        %vm320 = vweird.f32 %v306
        %vm321 = vweird.f32 %v314
        %vm322 = vmor %vm320, %vm321
        %v323 = vsel %vm322, %v314, %v319
        %v324 = vrsqrt.pop %v307
        %v325 = vmul.f32 %v324, %v307
        %v326 = vmul.f32 %v325, %v324
        %v327 = vmul.f32 0.5, %v326
        %v328 = vsub.f32 1.5, %v327
        %v329 = vmul.f32 %v324, %v328
        %vm330 = vweird.f32 %v307
        %vm331 = vweird.f32 %v324
        %vm332 = vmor %vm330, %vm331
        %v333 = vsel %vm332, %v324, %v329
        %v334 = vrsqrt.pop %v308
        %v335 = vmul.f32 %v334, %v308
        %v336 = vmul.f32 %v335, %v334
        %v337 = vmul.f32 0.5, %v336
        %v338 = vsub.f32 1.5, %v337
        %v339 = vmul.f32 %v334, %v338
        %vm340 = vweird.f32 %v308
        %vm341 = vweird.f32 %v334
        %vm342 = vmor %vm340, %vm341
        %v343 = vsel %vm342, %v334, %v339
        %v344 = vrsqrt.pop %v309
        %v345 = vmul.f32 %v344, %v309
        %v346 = vmul.f32 %v345, %v344
        %v347 = vmul.f32 0.5, %v346
        %v348 = vsub.f32 1.5, %v347
        %v349 = vmul.f32 %v344, %v348
        %vm350 = vweird.f32 %v309
        %vm351 = vweird.f32 %v344
        %vm352 = vmor %vm350, %vm351
        %v353 = vsel %vm352, %v344, %v349
        %v354 = vrsqrt.pop %v310
        %v355 = vmul.f32 %v354, %v310
        %v356 = vmul.f32 %v355, %v354
        %v357 = vmul.f32 0.5, %v356
        %v358 = vsub.f32 1.5, %v357
        %v359 = vmul.f32 %v354, %v358
        %vm360 = vweird.f32 %v310
        %vm361 = vweird.f32 %v354
        %vm362 = vmor %vm360, %vm361
        %v363 = vsel %vm362, %v354, %v359
        %v364 = vrsqrt.pop %v311
        %v365 = vmul.f32 %v364, %v311
        %v366 = vmul.f32 %v365, %v364
        %v367 = vmul.f32 0.5, %v366
        %v368 = vsub.f32 1.5, %v367
        %v369 = vmul.f32 %v364, %v368
        %vm370 = vweird.f32 %v311
        %vm371 = vweird.f32 %v364
        %vm372 = vmor %vm370, %vm371
        %v373 = vsel %vm372, %v364, %v369
        %v374 = vrsqrt.pop %v312
        %v375 = vmul.f32 %v374, %v312
        %v376 = vmul.f32 %v375, %v374
        %v377 = vmul.f32 0.5, %v376
        %v378 = vsub.f32 1.5, %v377
        %v379 = vmul.f32 %v374, %v378
        %vm380 = vweird.f32 %v312
        %vm381 = vweird.f32 %v374
        %vm382 = vmor %vm380, %vm381
        %v383 = vsel %vm382, %v374, %v379
        %v384 = vrsqrt.pop %v313
        %v385 = vmul.f32 %v384, %v313
        %v386 = vmul.f32 %v385, %v384
        %v387 = vmul.f32 0.5, %v386
        %v388 = vsub.f32 1.5, %v387
        %v389 = vmul.f32 %v384, %v388
        %vm390 = vweird.f32 %v313
        %vm391 = vweird.f32 %v384
        %vm392 = vmor %vm390, %vm391
        %v393 = vsel %vm392, %v384, %v389
        %v394 = vmul.f32 %v306, %v323
        %v395 = vmul.f32 %v307, %v333
        %v396 = vmul.f32 %v308, %v343
        %v397 = vmul.f32 %v309, %v353
        %v398 = vmul.f32 %v310, %v363
        %v399 = vmul.f32 %v311, %v373
        %v400 = vmul.f32 %v312, %v383
        %v401 = vmul.f32 %v313, %v393
        %v402 = vmin.f32 %v394, 0.99999
        %v403 = vmin.f32 %v395, 0.99999
        %v404 = vmin.f32 %v396, 0.99999
        %v405 = vmin.f32 %v397, 0.99999
        %v406 = vmin.f32 %v398, 0.99999
        %v407 = vmin.f32 %v399, 0.99999
        %v408 = vmin.f32 %v400, 0.99999
        %v409 = vmin.f32 %v401, 0.99999
        %v410 = vadd.f32 %v402, 1.0
        %v411 = vadd.f32 %v403, 1.0
        %v412 = vadd.f32 %v404, 1.0
        %v413 = vadd.f32 %v405, 1.0
        %v414 = vadd.f32 %v406, 1.0
        %v415 = vadd.f32 %v407, 1.0
        %v416 = vadd.f32 %v408, 1.0
        %v417 = vadd.f32 %v409, 1.0
        %v418 = vlog2.pop %v410
        %v419 = vmul.f32 %v418, 0.6931472
        %v420 = vlog2.pop %v411
        %v421 = vmul.f32 %v420, 0.6931472
        %v422 = vlog2.pop %v412
        %v423 = vmul.f32 %v422, 0.6931472
        %v424 = vlog2.pop %v413
        %v425 = vmul.f32 %v424, 0.6931472
        %v426 = vlog2.pop %v414
        %v427 = vmul.f32 %v426, 0.6931472
        %v428 = vlog2.pop %v415
        %v429 = vmul.f32 %v428, 0.6931472
        %v430 = vlog2.pop %v416
        %v431 = vmul.f32 %v430, 0.6931472
        %v432 = vlog2.pop %v417
        %v433 = vmul.f32 %v432, 0.6931472
        %v434 = vsub.f32 1.0, %v402
        %v435 = vsub.f32 1.0, %v403
        %v436 = vsub.f32 1.0, %v404
        %v437 = vsub.f32 1.0, %v405
        %v438 = vsub.f32 1.0, %v406
        %v439 = vsub.f32 1.0, %v407
        %v440 = vsub.f32 1.0, %v408
        %v441 = vsub.f32 1.0, %v409
        %v442 = vlog2.pop %v434
        %v443 = vmul.f32 %v442, 0.6931472
        %v444 = vlog2.pop %v435
        %v445 = vmul.f32 %v444, 0.6931472
        %v446 = vlog2.pop %v436
        %v447 = vmul.f32 %v446, 0.6931472
        %v448 = vlog2.pop %v437
        %v449 = vmul.f32 %v448, 0.6931472
        %v450 = vlog2.pop %v438
        %v451 = vmul.f32 %v450, 0.6931472
        %v452 = vlog2.pop %v439
        %v453 = vmul.f32 %v452, 0.6931472
        %v454 = vlog2.pop %v440
        %v455 = vmul.f32 %v454, 0.6931472
        %v456 = vlog2.pop %v441
        %v457 = vmul.f32 %v456, 0.6931472
        %v458 = vsub.f32 %v419, %v443
        %v459 = vsub.f32 %v421, %v445
        %v460 = vsub.f32 %v423, %v447
        %v461 = vsub.f32 %v425, %v449
        %v462 = vsub.f32 %v427, %v451
        %v463 = vsub.f32 %v429, %v453
        %v464 = vsub.f32 %v431, %v455
        %v465 = vsub.f32 %v433, %v457
        %v466 = vmul.f32 %v458, 0.5
        %v467 = vmul.f32 %v459, 0.5
        %v468 = vmul.f32 %v460, 0.5
        %v469 = vmul.f32 %v461, 0.5
        %v470 = vmul.f32 %v462, 0.5
        %v471 = vmul.f32 %v463, 0.5
        %v472 = vmul.f32 %v464, 0.5
        %v473 = vmul.f32 %v465, 0.5
        %v474 = vpack.c.bf16 %v259, %v258
        %v475 = vpack.c.bf16 %v261, %v260
        %v476 = vpack.c.bf16 %v263, %v262
        %v477 = vpack.c.bf16 %v265, %v264
        %v494 = vunpack.c.l.b16 %v266
        %v495 = vunpack.c.l.b16 %v267
        %v496 = vunpack.c.l.b16 %v268
        %v497 = vunpack.c.l.b16 %v269
        %v498 = vunpack.c.l.b16 %v270
        %v499 = vunpack.c.l.b16 %v271
        %v500 = vunpack.c.l.b16 %v272
        %v501 = vunpack.c.l.b16 %v273
        %v502 = vunpack.c.l.b16 %v274
        %v503 = vunpack.c.l.b16 %v275
        %v504 = vunpack.c.l.b16 %v276
        %v505 = vunpack.c.l.b16 %v277
        %v506 = vunpack.c.l.b16 %v278
        %v507 = vunpack.c.l.b16 %v279
        %v508 = vunpack.c.l.b16 %v280
        %v509 = vunpack.c.l.b16 %v281
        %v510 = vpack.c.b16 %v495, %v494
        %v511 = vpack.c.b16 %v497, %v496
        %v512 = vpack.c.b16 %v499, %v498
        %v513 = vpack.c.b16 %v501, %v500
        %v514 = vpack.c.b16 %v503, %v502
        %v515 = vpack.c.b16 %v505, %v504
        %v516 = vpack.c.b16 %v507, %v506
        %v517 = vpack.c.b16 %v509, %v508
        %526 = vmatpush.bf16.msra.mxu0 %v517
        %527 = vmatpush.bf16.msra.mxu0 %v516
        %528 = vmatpush.bf16.msra.mxu0 %v515
        %529 = vmatpush.bf16.msra.mxu0 %v514
        %530 = vmatpush.bf16.msra.mxu0 %v513
        %531 = vmatpush.bf16.msra.mxu0 %v512
        %532 = vmatpush.bf16.msra.mxu0 %v511
        %533 = vmatpush.bf16.msra.mxu0 %v510
        %534 = vmatmul.bf16.gmra.mxu0 %v474
        %v535 = vpop.f32.mrf.mxu0
        %v536 = vadd.f32 0.0, %v535
        %v537 = vpop.f32.mrf.mxu0
        %v538 = vadd.f32 0.0, %v537
        %539 = vmatmul.bf16.gmra.mxu0 %v475
        %v540 = vpop.f32.mrf.mxu0
        %v541 = vadd.f32 0.0, %v540
        %v542 = vpop.f32.mrf.mxu0
        %v543 = vadd.f32 0.0, %v542
        %544 = vmatmul.bf16.gmra.mxu0 %v476
        %v545 = vpop.f32.mrf.mxu0
        %v546 = vadd.f32 0.0, %v545
        %v547 = vpop.f32.mrf.mxu0
        %v548 = vadd.f32 0.0, %v547
        %549 = vmatmul.bf16.gmra.mxu0 %v477
        %v550 = vpop.f32.mrf.mxu0
        %v551 = vadd.f32 0.0, %v550
        %v552 = vpop.f32.mrf.mxu0
        %v553 = vadd.f32 0.0, %v552
        %554 = vdwg.mxu0
        %v555 = vmul.f32 %v536, %v536
        %v556 = vmul.f32 %v538, %v538
        %v557 = vmul.f32 %v541, %v541
        %v558 = vmul.f32 %v543, %v543
        %v559 = vmul.f32 %v546, %v546
        %v560 = vmul.f32 %v548, %v548
        %v561 = vmul.f32 %v551, %v551
        %v562 = vmul.f32 %v553, %v553
        %563 = vadd.xlane.f32.xlu0 %v555
        %v564 = vpop.xlane.xlu0 %563
        %565 = vadd.xlane.f32.xlu0 %v556
        %v566 = vpop.xlane.xlu0 %565
        %567 = vadd.xlane.f32.xlu0 %v557
        %v568 = vpop.xlane.xlu0 %567
        %569 = vadd.xlane.f32.xlu0 %v558
        %v570 = vpop.xlane.xlu0 %569
        %571 = vadd.xlane.f32.xlu0 %v559
        %v572 = vpop.xlane.xlu0 %571
        %573 = vadd.xlane.f32.xlu0 %v560
        %v574 = vpop.xlane.xlu0 %573
        %575 = vadd.xlane.f32.xlu0 %v561
        %v576 = vpop.xlane.xlu0 %575
        %577 = vadd.xlane.f32.xlu0 %v562
        %v578 = vpop.xlane.xlu0 %577
        %v579 = vmax.f32 %v564, 1e-30
        %v580 = vmax.f32 %v566, 1e-30
        %v581 = vmax.f32 %v568, 1e-30
        %v582 = vmax.f32 %v570, 1e-30
        %v583 = vmax.f32 %v572, 1e-30
        %v584 = vmax.f32 %v574, 1e-30
        %v585 = vmax.f32 %v576, 1e-30
        %v586 = vmax.f32 %v578, 1e-30
        %v587 = vrsqrt.pop %v579
        %v588 = vmul.f32 %v587, %v579
        %v589 = vmul.f32 %v588, %v587
        %v590 = vmul.f32 0.5, %v589
        %v591 = vsub.f32 1.5, %v590
        %v592 = vmul.f32 %v587, %v591
        %vm593 = vweird.f32 %v579
        %vm594 = vweird.f32 %v587
        %vm595 = vmor %vm593, %vm594
        %v596 = vsel %vm595, %v587, %v592
        %v597 = vrsqrt.pop %v580
        %v598 = vmul.f32 %v597, %v580
        %v599 = vmul.f32 %v598, %v597
        %v600 = vmul.f32 0.5, %v599
        %v601 = vsub.f32 1.5, %v600
        %v602 = vmul.f32 %v597, %v601
        %vm603 = vweird.f32 %v580
        %vm604 = vweird.f32 %v597
        %vm605 = vmor %vm603, %vm604
        %v606 = vsel %vm605, %v597, %v602
        %v607 = vrsqrt.pop %v581
        %v608 = vmul.f32 %v607, %v581
        %v609 = vmul.f32 %v608, %v607
        %v610 = vmul.f32 0.5, %v609
        %v611 = vsub.f32 1.5, %v610
        %v612 = vmul.f32 %v607, %v611
        %vm613 = vweird.f32 %v581
        %vm614 = vweird.f32 %v607
        %vm615 = vmor %vm613, %vm614
        %v616 = vsel %vm615, %v607, %v612
        %v617 = vrsqrt.pop %v582
        %v618 = vmul.f32 %v617, %v582
        %v619 = vmul.f32 %v618, %v617
        %v620 = vmul.f32 0.5, %v619
        %v621 = vsub.f32 1.5, %v620
        %v622 = vmul.f32 %v617, %v621
        %vm623 = vweird.f32 %v582
        %vm624 = vweird.f32 %v617
        %vm625 = vmor %vm623, %vm624
        %v626 = vsel %vm625, %v617, %v622
        %v627 = vrsqrt.pop %v583
        %v628 = vmul.f32 %v627, %v583
        %v629 = vmul.f32 %v628, %v627
        %v630 = vmul.f32 0.5, %v629
        %v631 = vsub.f32 1.5, %v630
        %v632 = vmul.f32 %v627, %v631
        %vm633 = vweird.f32 %v583
        %vm634 = vweird.f32 %v627
        %vm635 = vmor %vm633, %vm634
        %v636 = vsel %vm635, %v627, %v632
        %v637 = vrsqrt.pop %v584
        %v638 = vmul.f32 %v637, %v584
        %v639 = vmul.f32 %v638, %v637
        %v640 = vmul.f32 0.5, %v639
        %v641 = vsub.f32 1.5, %v640
        %v642 = vmul.f32 %v637, %v641
        %vm643 = vweird.f32 %v584
        %vm644 = vweird.f32 %v637
        %vm645 = vmor %vm643, %vm644
        %v646 = vsel %vm645, %v637, %v642
        %v647 = vrsqrt.pop %v585
        %v648 = vmul.f32 %v647, %v585
        %v649 = vmul.f32 %v648, %v647
        %v650 = vmul.f32 0.5, %v649
        %v651 = vsub.f32 1.5, %v650
        %v652 = vmul.f32 %v647, %v651
        %vm653 = vweird.f32 %v585
        %vm654 = vweird.f32 %v647
        %vm655 = vmor %vm653, %vm654
        %v656 = vsel %vm655, %v647, %v652
        %v657 = vrsqrt.pop %v586
        %v658 = vmul.f32 %v657, %v586
        %v659 = vmul.f32 %v658, %v657
        %v660 = vmul.f32 0.5, %v659
        %v661 = vsub.f32 1.5, %v660
        %v662 = vmul.f32 %v657, %v661
        %vm663 = vweird.f32 %v586
        %vm664 = vweird.f32 %v657
        %vm665 = vmor %vm663, %vm664
        %v666 = vsel %vm665, %v657, %v662
        %v667 = vmul.f32 %v466, %v323
        %v668 = vmul.f32 %v467, %v333
        %v669 = vmul.f32 %v468, %v343
        %v670 = vmul.f32 %v469, %v353
        %v671 = vmul.f32 %v470, %v363
        %v672 = vmul.f32 %v471, %v373
        %v673 = vmul.f32 %v472, %v383
        %v674 = vmul.f32 %v473, %v393
        %v675 = vmul.f32 %v596, 3.106303
        %v676 = vmul.f32 %v606, 3.106303
        %v677 = vmul.f32 %v616, 3.106303
        %v678 = vmul.f32 %v626, 3.106303
        %v679 = vmul.f32 %v636, 3.106303
        %v680 = vmul.f32 %v646, 3.106303
        %v681 = vmul.f32 %v656, 3.106303
        %v682 = vmul.f32 %v666, 3.106303
        %v683 = vmin.f32 %v667, %v675
        %v684 = vmin.f32 %v668, %v676
        %v685 = vmin.f32 %v669, %v677
        %v686 = vmin.f32 %v670, %v678
        %v687 = vmin.f32 %v671, %v679
        %v688 = vmin.f32 %v672, %v680
        %v689 = vmin.f32 %v673, %v681
        %v690 = vmin.f32 %v674, %v682
        %v691 = vmul.f32 %v683, %v536
        %v692 = vmul.f32 %v684, %v538
        %v693 = vmul.f32 %v685, %v541
        %v694 = vmul.f32 %v686, %v543
        %v695 = vmul.f32 %v687, %v546
        %v696 = vmul.f32 %v688, %v548
        %v697 = vmul.f32 %v689, %v551
        %v698 = vmul.f32 %v690, %v553
        %v699 = vpack.c.bf16 %v692, %v691
        %v700 = vpack.c.bf16 %v694, %v693
        %v701 = vpack.c.bf16 %v696, %v695
        %v702 = vpack.c.bf16 %v698, %v697
        %v711 = vunpack.c.l.b16 %v250
        %v712 = vunpack.c.l.b16 %v251
        %v713 = vunpack.c.l.b16 %v252
        %v714 = vunpack.c.l.b16 %v253
        %v715 = vunpack.c.l.b16 %v254
        %v716 = vunpack.c.l.b16 %v255
        %v717 = vunpack.c.l.b16 %v256
        %v718 = vunpack.c.l.b16 %v257
        %v719 = vpack.c.b16 %v712, %v711
        %v720 = vpack.c.b16 %v714, %v713
        %v721 = vpack.c.b16 %v716, %v715
        %v722 = vpack.c.b16 %v718, %v717
        %vm723 = vcmask 523264
        %v725 = vsel %vm723, %v719, 0
        %v728 = vsel %vm723, %v720, 0
        %v731 = vsel %vm723, %v721, 0
        %v734 = vsel %vm723, %v722, 0
        %736 = vmatpush.bf16.msra.mxu0 0
        %737 = vmatpush.bf16.msra.mxu0 0
        %738 = vmatpush.bf16.msra.mxu0 0
        %739 = vmatpush.bf16.msra.mxu0 0
        %740 = vmatpush.bf16.msra.mxu0 %v702
        %741 = vmatpush.bf16.msra.mxu0 %v701
        %742 = vmatpush.bf16.msra.mxu0 %v700
        %743 = vmatpush.bf16.msra.mxu0 %v699
        %744 = vmatmul.bf16.gmra.mxu0 %v725
        %v745 = vpop.f32.mrf.mxu0
        %v746 = vadd.f32 0.0, %v745
        %v747 = vpop.f32.mrf.mxu0
        %v748 = vadd.f32 0.0, %v747
        %749 = vmatmul.bf16.gmra.mxu0 %v728
        %v750 = vpop.f32.mrf.mxu0
        %v751 = vadd.f32 0.0, %v750
        %v752 = vpop.f32.mrf.mxu0
        %v753 = vadd.f32 0.0, %v752
        %754 = vmatmul.bf16.gmra.mxu0 %v731
        %v755 = vpop.f32.mrf.mxu0
        %v756 = vadd.f32 0.0, %v755
        %v757 = vpop.f32.mrf.mxu0
        %v758 = vadd.f32 0.0, %v757
        %759 = vmatmul.bf16.gmra.mxu0 %v734
        %v760 = vpop.f32.mrf.mxu0
        %v761 = vadd.f32 0.0, %v760
        %v762 = vpop.f32.mrf.mxu0
        %v763 = vadd.f32 0.0, %v762
        %764 = vdwg.mxu0
        %v765 = vmul.f32 %v746, %v746
        %v766 = vmul.f32 %v748, %v748
        %v767 = vmul.f32 %v751, %v751
        %v768 = vmul.f32 %v753, %v753
        %v769 = vmul.f32 %v756, %v756
        %v770 = vmul.f32 %v758, %v758
        %v771 = vmul.f32 %v761, %v761
        %v772 = vmul.f32 %v763, %v763
        %773 = vadd.xlane.f32.xlu0 %v765
        %v774 = vpop.xlane.xlu0 %773
        %775 = vadd.xlane.f32.xlu0 %v766
        %v776 = vpop.xlane.xlu0 %775
        %777 = vadd.xlane.f32.xlu0 %v767
        %v778 = vpop.xlane.xlu0 %777
        %779 = vadd.xlane.f32.xlu0 %v768
        %v780 = vpop.xlane.xlu0 %779
        %781 = vadd.xlane.f32.xlu0 %v769
        %v782 = vpop.xlane.xlu0 %781
        %783 = vadd.xlane.f32.xlu0 %v770
        %v784 = vpop.xlane.xlu0 %783
        %785 = vadd.xlane.f32.xlu0 %v771
        %v786 = vpop.xlane.xlu0 %785
        %787 = vadd.xlane.f32.xlu0 %v772
        %v788 = vpop.xlane.xlu0 %787
        %v789 = vmax.f32 %v774, 1e-30
        %v790 = vmax.f32 %v776, 1e-30
        %v791 = vmax.f32 %v778, 1e-30
        %v792 = vmax.f32 %v780, 1e-30
        %v793 = vmax.f32 %v782, 1e-30
        %v794 = vmax.f32 %v784, 1e-30
        %v795 = vmax.f32 %v786, 1e-30
        %v796 = vmax.f32 %v788, 1e-30
        %v797 = vrsqrt.pop %v789
        %v798 = vmul.f32 %v797, %v789
        %v799 = vmul.f32 %v798, %v797
        %v800 = vmul.f32 0.5, %v799
        %v801 = vsub.f32 1.5, %v800
        %v802 = vmul.f32 %v797, %v801
        %vm803 = vweird.f32 %v789
        %vm804 = vweird.f32 %v797
        %vm805 = vmor %vm803, %vm804
        %v806 = vsel %vm805, %v797, %v802
        %v807 = vrsqrt.pop %v790
        %v808 = vmul.f32 %v807, %v790
        %v809 = vmul.f32 %v808, %v807
        %v810 = vmul.f32 0.5, %v809
        %v811 = vsub.f32 1.5, %v810
        %v812 = vmul.f32 %v807, %v811
        %vm813 = vweird.f32 %v790
        %vm814 = vweird.f32 %v807
        %vm815 = vmor %vm813, %vm814
        %v816 = vsel %vm815, %v807, %v812
        %v817 = vrsqrt.pop %v791
        %v818 = vmul.f32 %v817, %v791
        %v819 = vmul.f32 %v818, %v817
        %v820 = vmul.f32 0.5, %v819
        %v821 = vsub.f32 1.5, %v820
        %v822 = vmul.f32 %v817, %v821
        %vm823 = vweird.f32 %v791
        %vm824 = vweird.f32 %v817
        %vm825 = vmor %vm823, %vm824
        %v826 = vsel %vm825, %v817, %v822
        %v827 = vrsqrt.pop %v792
        %v828 = vmul.f32 %v827, %v792
        %v829 = vmul.f32 %v828, %v827
        %v830 = vmul.f32 0.5, %v829
        %v831 = vsub.f32 1.5, %v830
        %v832 = vmul.f32 %v827, %v831
        %vm833 = vweird.f32 %v792
        %vm834 = vweird.f32 %v827
        %vm835 = vmor %vm833, %vm834
        %v836 = vsel %vm835, %v827, %v832
        %v837 = vrsqrt.pop %v793
        %v838 = vmul.f32 %v837, %v793
        %v839 = vmul.f32 %v838, %v837
        %v840 = vmul.f32 0.5, %v839
        %v841 = vsub.f32 1.5, %v840
        %v842 = vmul.f32 %v837, %v841
        %vm843 = vweird.f32 %v793
        %vm844 = vweird.f32 %v837
        %vm845 = vmor %vm843, %vm844
        %v846 = vsel %vm845, %v837, %v842
        %v847 = vrsqrt.pop %v794
        %v848 = vmul.f32 %v847, %v794
        %v849 = vmul.f32 %v848, %v847
        %v850 = vmul.f32 0.5, %v849
        %v851 = vsub.f32 1.5, %v850
        %v852 = vmul.f32 %v847, %v851
        %vm853 = vweird.f32 %v794
        %vm854 = vweird.f32 %v847
        %vm855 = vmor %vm853, %vm854
        %v856 = vsel %vm855, %v847, %v852
        %v857 = vrsqrt.pop %v795
        %v858 = vmul.f32 %v857, %v795
        %v859 = vmul.f32 %v858, %v857
        %v860 = vmul.f32 0.5, %v859
        %v861 = vsub.f32 1.5, %v860
        %v862 = vmul.f32 %v857, %v861
        %vm863 = vweird.f32 %v795
        %vm864 = vweird.f32 %v857
        %vm865 = vmor %vm863, %vm864
        %v866 = vsel %vm865, %v857, %v862
        %v867 = vrsqrt.pop %v796
        %v868 = vmul.f32 %v867, %v796
        %v869 = vmul.f32 %v868, %v867
        %v870 = vmul.f32 0.5, %v869
        %v871 = vsub.f32 1.5, %v870
        %v872 = vmul.f32 %v867, %v871
        %vm873 = vweird.f32 %v796
        %vm874 = vweird.f32 %v867
        %vm875 = vmor %vm873, %vm874
        %v876 = vsel %vm875, %v867, %v872
        %v877 = vmul.f32 %v789, %v806
        %v878 = vmul.f32 %v790, %v816
        %v879 = vmul.f32 %v791, %v826
        %v880 = vmul.f32 %v792, %v836
        %v881 = vmul.f32 %v793, %v846
        %v882 = vmul.f32 %v794, %v856
        %v883 = vmul.f32 %v795, %v866
        %v884 = vmul.f32 %v796, %v876
        %v885 = vtanh.pop %v877
        %v886 = vtanh.pop %v878
        %v887 = vtanh.pop %v879
        %v888 = vtanh.pop %v880
        %v889 = vtanh.pop %v881
        %v890 = vtanh.pop %v882
        %v891 = vtanh.pop %v883
        %v892 = vtanh.pop %v884
        %v893 = vmin.f32 %v885, 0.996
        %v894 = vmin.f32 %v886, 0.996
        %v895 = vmin.f32 %v887, 0.996
        %v896 = vmin.f32 %v888, 0.996
        %v897 = vmin.f32 %v889, 0.996
        %v898 = vmin.f32 %v890, 0.996
        %v899 = vmin.f32 %v891, 0.996
        %v900 = vmin.f32 %v892, 0.996
        %v901 = vmul.f32 %v893, %v806
        %v902 = vmul.f32 %v894, %v816
        %v903 = vmul.f32 %v895, %v826
        %v904 = vmul.f32 %v896, %v836
        %v905 = vmul.f32 %v897, %v846
        %v906 = vmul.f32 %v898, %v856
        %v907 = vmul.f32 %v899, %v866
        %v908 = vmul.f32 %v900, %v876
        %v909 = vmul.f32 %v901, %v746
        %v910 = vmul.f32 %v902, %v748
        %v911 = vmul.f32 %v903, %v751
        %v912 = vmul.f32 %v904, %v753
        %v913 = vmul.f32 %v905, %v756
        %v914 = vmul.f32 %v906, %v758
        %v915 = vmul.f32 %v907, %v761
        %v916 = vmul.f32 %v908, %v763
        %s917 = scalar_lea.vmem [#allocation7], 64
        %v918 = vld [vmem:[%s917] sm:$0xf]
        %v919 = vld [vmem:[%s917 + $0x4] sm:$0xf]
        %v920 = vld [vmem:[%s917 + $0x8] sm:$0xf]
        %v921 = vld [vmem:[%s917 + $0xc] sm:$0xf]
        %v922 = vld [vmem:[%s917 + $0x10] sm:$0xf]
        %v923 = vld [vmem:[%s917 + $0x14] sm:$0xf]
        %v924 = vld [vmem:[%s917 + $0x18] sm:$0xf]
        %v925 = vld [vmem:[%s917 + $0x1c] sm:$0xf]
        %v926 = vld [vmem:[%s917 + $0x20] sm:$0xf]
        %v927 = vld [vmem:[%s917 + $0x24] sm:$0xf]
        %v928 = vld [vmem:[%s917 + $0x28] sm:$0xf]
        %v929 = vld [vmem:[%s917 + $0x2c] sm:$0xf]
        %v930 = vld [vmem:[%s917 + $0x30] sm:$0xf]
        %v931 = vld [vmem:[%s917 + $0x34] sm:$0xf]
        %v932 = vld [vmem:[%s917 + $0x38] sm:$0xf]
        %v933 = vld [vmem:[%s917 + $0x3c] sm:$0xf]
        %v934 = vmul.f32 %v909, %v909
        %v935 = vmul.f32 %v910, %v910
        %v936 = vmul.f32 %v911, %v911
        %v937 = vmul.f32 %v912, %v912
        %v938 = vmul.f32 %v913, %v913
        %v939 = vmul.f32 %v914, %v914
        %v940 = vmul.f32 %v915, %v915
        %v941 = vmul.f32 %v916, %v916
        %942 = vadd.xlane.f32.xlu0 %v934
        %v943 = vpop.xlane.xlu0 %942
        %944 = vadd.xlane.f32.xlu0 %v935
        %v945 = vpop.xlane.xlu0 %944
        %946 = vadd.xlane.f32.xlu0 %v936
        %v947 = vpop.xlane.xlu0 %946
        %948 = vadd.xlane.f32.xlu0 %v937
        %v949 = vpop.xlane.xlu0 %948
        %950 = vadd.xlane.f32.xlu0 %v938
        %v951 = vpop.xlane.xlu0 %950
        %952 = vadd.xlane.f32.xlu0 %v939
        %v953 = vpop.xlane.xlu0 %952
        %954 = vadd.xlane.f32.xlu0 %v940
        %v955 = vpop.xlane.xlu0 %954
        %956 = vadd.xlane.f32.xlu0 %v941
        %v957 = vpop.xlane.xlu0 %956
        %v958 = vmax.f32 %v943, 1e-30
        %v959 = vmax.f32 %v945, 1e-30
        %v960 = vmax.f32 %v947, 1e-30
        %v961 = vmax.f32 %v949, 1e-30
        %v962 = vmax.f32 %v951, 1e-30
        %v963 = vmax.f32 %v953, 1e-30
        %v964 = vmax.f32 %v955, 1e-30
        %v965 = vmax.f32 %v957, 1e-30
        %v966 = vrsqrt.pop %v958
        %v967 = vmul.f32 %v966, %v958
        %v968 = vmul.f32 %v967, %v966
        %v969 = vmul.f32 0.5, %v968
        %v970 = vsub.f32 1.5, %v969
        %v971 = vmul.f32 %v966, %v970
        %vm972 = vweird.f32 %v958
        %vm973 = vweird.f32 %v966
        %vm974 = vmor %vm972, %vm973
        %v975 = vsel %vm974, %v966, %v971
        %v976 = vrsqrt.pop %v959
        %v977 = vmul.f32 %v976, %v959
        %v978 = vmul.f32 %v977, %v976
        %v979 = vmul.f32 0.5, %v978
        %v980 = vsub.f32 1.5, %v979
        %v981 = vmul.f32 %v976, %v980
        %vm982 = vweird.f32 %v959
        %vm983 = vweird.f32 %v976
        %vm984 = vmor %vm982, %vm983
        %v985 = vsel %vm984, %v976, %v981
        %v986 = vrsqrt.pop %v960
        %v987 = vmul.f32 %v986, %v960
        %v988 = vmul.f32 %v987, %v986
        %v989 = vmul.f32 0.5, %v988
        %v990 = vsub.f32 1.5, %v989
        %v991 = vmul.f32 %v986, %v990
        %vm992 = vweird.f32 %v960
        %vm993 = vweird.f32 %v986
        %vm994 = vmor %vm992, %vm993
        %v995 = vsel %vm994, %v986, %v991
        %v996 = vrsqrt.pop %v961
        %v997 = vmul.f32 %v996, %v961
        %v998 = vmul.f32 %v997, %v996
        %v999 = vmul.f32 0.5, %v998
        %v1000 = vsub.f32 1.5, %v999
        %v1001 = vmul.f32 %v996, %v1000
        %vm1002 = vweird.f32 %v961
        %vm1003 = vweird.f32 %v996
        %vm1004 = vmor %vm1002, %vm1003
        %v1005 = vsel %vm1004, %v996, %v1001
        %v1006 = vrsqrt.pop %v962
        %v1007 = vmul.f32 %v1006, %v962
        %v1008 = vmul.f32 %v1007, %v1006
        %v1009 = vmul.f32 0.5, %v1008
        %v1010 = vsub.f32 1.5, %v1009
        %v1011 = vmul.f32 %v1006, %v1010
        %vm1012 = vweird.f32 %v962
        %vm1013 = vweird.f32 %v1006
        %vm1014 = vmor %vm1012, %vm1013
        %v1015 = vsel %vm1014, %v1006, %v1011
        %v1016 = vrsqrt.pop %v963
        %v1017 = vmul.f32 %v1016, %v963
        %v1018 = vmul.f32 %v1017, %v1016
        %v1019 = vmul.f32 0.5, %v1018
        %v1020 = vsub.f32 1.5, %v1019
        %v1021 = vmul.f32 %v1016, %v1020
        %vm1022 = vweird.f32 %v963
        %vm1023 = vweird.f32 %v1016
        %vm1024 = vmor %vm1022, %vm1023
        %v1025 = vsel %vm1024, %v1016, %v1021
        %v1026 = vrsqrt.pop %v964
        %v1027 = vmul.f32 %v1026, %v964
        %v1028 = vmul.f32 %v1027, %v1026
        %v1029 = vmul.f32 0.5, %v1028
        %v1030 = vsub.f32 1.5, %v1029
        %v1031 = vmul.f32 %v1026, %v1030
        %vm1032 = vweird.f32 %v964
        %vm1033 = vweird.f32 %v1026
        %vm1034 = vmor %vm1032, %vm1033
        %v1035 = vsel %vm1034, %v1026, %v1031
        %v1036 = vrsqrt.pop %v965
        %v1037 = vmul.f32 %v1036, %v965
        %v1038 = vmul.f32 %v1037, %v1036
        %v1039 = vmul.f32 0.5, %v1038
        %v1040 = vsub.f32 1.5, %v1039
        %v1041 = vmul.f32 %v1036, %v1040
        %vm1042 = vweird.f32 %v965
        %vm1043 = vweird.f32 %v1036
        %vm1044 = vmor %vm1042, %vm1043
        %v1045 = vsel %vm1044, %v1036, %v1041
        %v1046 = vmul.f32 %v958, %v975
        %v1047 = vmul.f32 %v959, %v985
        %v1048 = vmul.f32 %v960, %v995
        %v1049 = vmul.f32 %v961, %v1005
        %v1050 = vmul.f32 %v962, %v1015
        %v1051 = vmul.f32 %v963, %v1025
        %v1052 = vmul.f32 %v964, %v1035
        %v1053 = vmul.f32 %v965, %v1045
        %v1054 = vmin.f32 %v1046, 0.99999
        %v1055 = vmin.f32 %v1047, 0.99999
        %v1056 = vmin.f32 %v1048, 0.99999
        %v1057 = vmin.f32 %v1049, 0.99999
        %v1058 = vmin.f32 %v1050, 0.99999
        %v1059 = vmin.f32 %v1051, 0.99999
        %v1060 = vmin.f32 %v1052, 0.99999
        %v1061 = vmin.f32 %v1053, 0.99999
        %v1062 = vadd.f32 %v1054, 1.0
        %v1063 = vadd.f32 %v1055, 1.0
        %v1064 = vadd.f32 %v1056, 1.0
        %v1065 = vadd.f32 %v1057, 1.0
        %v1066 = vadd.f32 %v1058, 1.0
        %v1067 = vadd.f32 %v1059, 1.0
        %v1068 = vadd.f32 %v1060, 1.0
        %v1069 = vadd.f32 %v1061, 1.0
        %v1070 = vlog2.pop %v1062
        %v1071 = vmul.f32 %v1070, 0.6931472
        %v1072 = vlog2.pop %v1063
        %v1073 = vmul.f32 %v1072, 0.6931472
        %v1074 = vlog2.pop %v1064
        %v1075 = vmul.f32 %v1074, 0.6931472
        %v1076 = vlog2.pop %v1065
        %v1077 = vmul.f32 %v1076, 0.6931472
        %v1078 = vlog2.pop %v1066
        %v1079 = vmul.f32 %v1078, 0.6931472
        %v1080 = vlog2.pop %v1067
        %v1081 = vmul.f32 %v1080, 0.6931472
        %v1082 = vlog2.pop %v1068
        %v1083 = vmul.f32 %v1082, 0.6931472
        %v1084 = vlog2.pop %v1069
        %v1085 = vmul.f32 %v1084, 0.6931472
        %v1086 = vsub.f32 1.0, %v1054
        %v1087 = vsub.f32 1.0, %v1055
        %v1088 = vsub.f32 1.0, %v1056
        %v1089 = vsub.f32 1.0, %v1057
        %v1090 = vsub.f32 1.0, %v1058
        %v1091 = vsub.f32 1.0, %v1059
        %v1092 = vsub.f32 1.0, %v1060
        %v1093 = vsub.f32 1.0, %v1061
        %v1094 = vlog2.pop %v1086
        %v1095 = vmul.f32 %v1094, 0.6931472
        %v1096 = vlog2.pop %v1087
        %v1097 = vmul.f32 %v1096, 0.6931472
        %v1098 = vlog2.pop %v1088
        %v1099 = vmul.f32 %v1098, 0.6931472
        %v1100 = vlog2.pop %v1089
        %v1101 = vmul.f32 %v1100, 0.6931472
        %v1102 = vlog2.pop %v1090
        %v1103 = vmul.f32 %v1102, 0.6931472
        %v1104 = vlog2.pop %v1091
        %v1105 = vmul.f32 %v1104, 0.6931472
        %v1106 = vlog2.pop %v1092
        %v1107 = vmul.f32 %v1106, 0.6931472
        %v1108 = vlog2.pop %v1093
        %v1109 = vmul.f32 %v1108, 0.6931472
        %v1110 = vsub.f32 %v1071, %v1095
        %v1111 = vsub.f32 %v1073, %v1097
        %v1112 = vsub.f32 %v1075, %v1099
        %v1113 = vsub.f32 %v1077, %v1101
        %v1114 = vsub.f32 %v1079, %v1103
        %v1115 = vsub.f32 %v1081, %v1105
        %v1116 = vsub.f32 %v1083, %v1107
        %v1117 = vsub.f32 %v1085, %v1109
        %v1118 = vmul.f32 %v1110, 0.5
        %v1119 = vmul.f32 %v1111, 0.5
        %v1120 = vmul.f32 %v1112, 0.5
        %v1121 = vmul.f32 %v1113, 0.5
        %v1122 = vmul.f32 %v1114, 0.5
        %v1123 = vmul.f32 %v1115, 0.5
        %v1124 = vmul.f32 %v1116, 0.5
        %v1125 = vmul.f32 %v1117, 0.5
        %v1126 = vpack.c.bf16 %v910, %v909
        %v1127 = vpack.c.bf16 %v912, %v911
        %v1128 = vpack.c.bf16 %v914, %v913
        %v1129 = vpack.c.bf16 %v916, %v915
        %v1146 = vunpack.c.l.b16 %v918
        %v1147 = vunpack.c.l.b16 %v919
        %v1148 = vunpack.c.l.b16 %v920
        %v1149 = vunpack.c.l.b16 %v921
        %v1150 = vunpack.c.l.b16 %v922
        %v1151 = vunpack.c.l.b16 %v923
        %v1152 = vunpack.c.l.b16 %v924
        %v1153 = vunpack.c.l.b16 %v925
        %v1154 = vunpack.c.l.b16 %v926
        %v1155 = vunpack.c.l.b16 %v927
        %v1156 = vunpack.c.l.b16 %v928
        %v1157 = vunpack.c.l.b16 %v929
        %v1158 = vunpack.c.l.b16 %v930
        %v1159 = vunpack.c.l.b16 %v931
        %v1160 = vunpack.c.l.b16 %v932
        %v1161 = vunpack.c.l.b16 %v933
        %v1162 = vpack.c.b16 %v1147, %v1146
        %v1163 = vpack.c.b16 %v1149, %v1148
        %v1164 = vpack.c.b16 %v1151, %v1150
        %v1165 = vpack.c.b16 %v1153, %v1152
        %v1166 = vpack.c.b16 %v1155, %v1154
        %v1167 = vpack.c.b16 %v1157, %v1156
        %v1168 = vpack.c.b16 %v1159, %v1158
        %v1169 = vpack.c.b16 %v1161, %v1160
        %1178 = vmatpush.bf16.msra.mxu0 %v1169
        %1179 = vmatpush.bf16.msra.mxu0 %v1168
        %1180 = vmatpush.bf16.msra.mxu0 %v1167
        %1181 = vmatpush.bf16.msra.mxu0 %v1166
        %1182 = vmatpush.bf16.msra.mxu0 %v1165
        %1183 = vmatpush.bf16.msra.mxu0 %v1164
        %1184 = vmatpush.bf16.msra.mxu0 %v1163
        %1185 = vmatpush.bf16.msra.mxu0 %v1162
        %1186 = vmatmul.bf16.gmra.mxu0 %v1126
        %v1187 = vpop.f32.mrf.mxu0
        %v1188 = vadd.f32 0.0, %v1187
        %v1189 = vpop.f32.mrf.mxu0
        %v1190 = vadd.f32 0.0, %v1189
        %1191 = vmatmul.bf16.gmra.mxu0 %v1127
        %v1192 = vpop.f32.mrf.mxu0
        %v1193 = vadd.f32 0.0, %v1192
        %v1194 = vpop.f32.mrf.mxu0
        %v1195 = vadd.f32 0.0, %v1194
        %1196 = vmatmul.bf16.gmra.mxu0 %v1128
        %v1197 = vpop.f32.mrf.mxu0
        %v1198 = vadd.f32 0.0, %v1197
        %v1199 = vpop.f32.mrf.mxu0
        %v1200 = vadd.f32 0.0, %v1199
        %1201 = vmatmul.bf16.gmra.mxu0 %v1129
        %v1202 = vpop.f32.mrf.mxu0
        %v1203 = vadd.f32 0.0, %v1202
        %v1204 = vpop.f32.mrf.mxu0
        %v1205 = vadd.f32 0.0, %v1204
        %1206 = vdwg.mxu0
        %v1207 = vmul.f32 %v1188, %v1188
        %v1208 = vmul.f32 %v1190, %v1190
        %v1209 = vmul.f32 %v1193, %v1193
        %v1210 = vmul.f32 %v1195, %v1195
        %v1211 = vmul.f32 %v1198, %v1198
        %v1212 = vmul.f32 %v1200, %v1200
        %v1213 = vmul.f32 %v1203, %v1203
        %v1214 = vmul.f32 %v1205, %v1205
        %1215 = vadd.xlane.f32.xlu0 %v1207
        %v1216 = vpop.xlane.xlu0 %1215
        %1217 = vadd.xlane.f32.xlu0 %v1208
        %v1218 = vpop.xlane.xlu0 %1217
        %1219 = vadd.xlane.f32.xlu0 %v1209
        %v1220 = vpop.xlane.xlu0 %1219
        %1221 = vadd.xlane.f32.xlu0 %v1210
        %v1222 = vpop.xlane.xlu0 %1221
        %1223 = vadd.xlane.f32.xlu0 %v1211
        %v1224 = vpop.xlane.xlu0 %1223
        %1225 = vadd.xlane.f32.xlu0 %v1212
        %v1226 = vpop.xlane.xlu0 %1225
        %1227 = vadd.xlane.f32.xlu0 %v1213
        %v1228 = vpop.xlane.xlu0 %1227
        %1229 = vadd.xlane.f32.xlu0 %v1214
        %v1230 = vpop.xlane.xlu0 %1229
        %v1231 = vmax.f32 %v1216, 1e-30
        %v1232 = vmax.f32 %v1218, 1e-30
        %v1233 = vmax.f32 %v1220, 1e-30
        %v1234 = vmax.f32 %v1222, 1e-30
        %v1235 = vmax.f32 %v1224, 1e-30
        %v1236 = vmax.f32 %v1226, 1e-30
        %v1237 = vmax.f32 %v1228, 1e-30
        %v1238 = vmax.f32 %v1230, 1e-30
        %v1239 = vrsqrt.pop %v1231
        %v1240 = vmul.f32 %v1239, %v1231
        %v1241 = vmul.f32 %v1240, %v1239
        %v1242 = vmul.f32 0.5, %v1241
        %v1243 = vsub.f32 1.5, %v1242
        %v1244 = vmul.f32 %v1239, %v1243
        %vm1245 = vweird.f32 %v1231
        %vm1246 = vweird.f32 %v1239
        %vm1247 = vmor %vm1245, %vm1246
        %v1248 = vsel %vm1247, %v1239, %v1244
        %v1249 = vrsqrt.pop %v1232
        %v1250 = vmul.f32 %v1249, %v1232
        %v1251 = vmul.f32 %v1250, %v1249
        %v1252 = vmul.f32 0.5, %v1251
        %v1253 = vsub.f32 1.5, %v1252
        %v1254 = vmul.f32 %v1249, %v1253
        %vm1255 = vweird.f32 %v1232
        %vm1256 = vweird.f32 %v1249
        %vm1257 = vmor %vm1255, %vm1256
        %v1258 = vsel %vm1257, %v1249, %v1254
        %v1259 = vrsqrt.pop %v1233
        %v1260 = vmul.f32 %v1259, %v1233
        %v1261 = vmul.f32 %v1260, %v1259
        %v1262 = vmul.f32 0.5, %v1261
        %v1263 = vsub.f32 1.5, %v1262
        %v1264 = vmul.f32 %v1259, %v1263
        %vm1265 = vweird.f32 %v1233
        %vm1266 = vweird.f32 %v1259
        %vm1267 = vmor %vm1265, %vm1266
        %v1268 = vsel %vm1267, %v1259, %v1264
        %v1269 = vrsqrt.pop %v1234
        %v1270 = vmul.f32 %v1269, %v1234
        %v1271 = vmul.f32 %v1270, %v1269
        %v1272 = vmul.f32 0.5, %v1271
        %v1273 = vsub.f32 1.5, %v1272
        %v1274 = vmul.f32 %v1269, %v1273
        %vm1275 = vweird.f32 %v1234
        %vm1276 = vweird.f32 %v1269
        %vm1277 = vmor %vm1275, %vm1276
        %v1278 = vsel %vm1277, %v1269, %v1274
        %v1279 = vrsqrt.pop %v1235
        %v1280 = vmul.f32 %v1279, %v1235
        %v1281 = vmul.f32 %v1280, %v1279
        %v1282 = vmul.f32 0.5, %v1281
        %v1283 = vsub.f32 1.5, %v1282
        %v1284 = vmul.f32 %v1279, %v1283
        %vm1285 = vweird.f32 %v1235
        %vm1286 = vweird.f32 %v1279
        %vm1287 = vmor %vm1285, %vm1286
        %v1288 = vsel %vm1287, %v1279, %v1284
        %v1289 = vrsqrt.pop %v1236
        %v1290 = vmul.f32 %v1289, %v1236
        %v1291 = vmul.f32 %v1290, %v1289
        %v1292 = vmul.f32 0.5, %v1291
        %v1293 = vsub.f32 1.5, %v1292
        %v1294 = vmul.f32 %v1289, %v1293
        %vm1295 = vweird.f32 %v1236
        %vm1296 = vweird.f32 %v1289
        %vm1297 = vmor %vm1295, %vm1296
        %v1298 = vsel %vm1297, %v1289, %v1294
        %v1299 = vrsqrt.pop %v1237
        %v1300 = vmul.f32 %v1299, %v1237
        %v1301 = vmul.f32 %v1300, %v1299
        %v1302 = vmul.f32 0.5, %v1301
        %v1303 = vsub.f32 1.5, %v1302
        %v1304 = vmul.f32 %v1299, %v1303
        %vm1305 = vweird.f32 %v1237
        %vm1306 = vweird.f32 %v1299
        %vm1307 = vmor %vm1305, %vm1306
        %v1308 = vsel %vm1307, %v1299, %v1304
        %v1309 = vrsqrt.pop %v1238
        %v1310 = vmul.f32 %v1309, %v1238
        %v1311 = vmul.f32 %v1310, %v1309
        %v1312 = vmul.f32 0.5, %v1311
        %v1313 = vsub.f32 1.5, %v1312
        %v1314 = vmul.f32 %v1309, %v1313
        %vm1315 = vweird.f32 %v1238
        %vm1316 = vweird.f32 %v1309
        %vm1317 = vmor %vm1315, %vm1316
        %v1318 = vsel %vm1317, %v1309, %v1314
        %v1319 = vmul.f32 %v1118, %v975
        %v1320 = vmul.f32 %v1119, %v985
        %v1321 = vmul.f32 %v1120, %v995
        %v1322 = vmul.f32 %v1121, %v1005
        %v1323 = vmul.f32 %v1122, %v1015
        %v1324 = vmul.f32 %v1123, %v1025
        %v1325 = vmul.f32 %v1124, %v1035
        %v1326 = vmul.f32 %v1125, %v1045
        %v1327 = vmul.f32 %v1248, 3.106303
        %v1328 = vmul.f32 %v1258, 3.106303
        %v1329 = vmul.f32 %v1268, 3.106303
        %v1330 = vmul.f32 %v1278, 3.106303
        %v1331 = vmul.f32 %v1288, 3.106303
        %v1332 = vmul.f32 %v1298, 3.106303
        %v1333 = vmul.f32 %v1308, 3.106303
        %v1334 = vmul.f32 %v1318, 3.106303
        %v1335 = vmin.f32 %v1319, %v1327
        %v1336 = vmin.f32 %v1320, %v1328
        %v1337 = vmin.f32 %v1321, %v1329
        %v1338 = vmin.f32 %v1322, %v1330
        %v1339 = vmin.f32 %v1323, %v1331
        %v1340 = vmin.f32 %v1324, %v1332
        %v1341 = vmin.f32 %v1325, %v1333
        %v1342 = vmin.f32 %v1326, %v1334
        %v1343 = vmul.f32 %v1335, %v1188
        %v1344 = vmul.f32 %v1336, %v1190
        %v1345 = vmul.f32 %v1337, %v1193
        %v1346 = vmul.f32 %v1338, %v1195
        %v1347 = vmul.f32 %v1339, %v1198
        %v1348 = vmul.f32 %v1340, %v1200
        %v1349 = vmul.f32 %v1341, %v1203
        %v1350 = vmul.f32 %v1342, %v1205
        %v1351 = vpack.c.bf16 %v1344, %v1343
        %v1352 = vpack.c.bf16 %v1346, %v1345
        %v1353 = vpack.c.bf16 %v1348, %v1347
        %v1354 = vpack.c.bf16 %v1350, %v1349
        %1355 = vmatpush.bf16.msra.mxu0 0
        %1356 = vmatpush.bf16.msra.mxu0 0
        %1357 = vmatpush.bf16.msra.mxu0 0
        %1358 = vmatpush.bf16.msra.mxu0 0
        %1359 = vmatpush.bf16.msra.mxu0 %v1354
        %1360 = vmatpush.bf16.msra.mxu0 %v1353
        %1361 = vmatpush.bf16.msra.mxu0 %v1352
        %1362 = vmatpush.bf16.msra.mxu0 %v1351
        %1363 = vmatmul.bf16.gmra.mxu0 %v725
        %v1364 = vpop.f32.mrf.mxu0
        %v1365 = vadd.f32 0.0, %v1364
        %v1366 = vpop.f32.mrf.mxu0
        %v1367 = vadd.f32 0.0, %v1366
        %1368 = vmatmul.bf16.gmra.mxu0 %v728
        %v1369 = vpop.f32.mrf.mxu0
        %v1370 = vadd.f32 0.0, %v1369
        %v1371 = vpop.f32.mrf.mxu0
        %v1372 = vadd.f32 0.0, %v1371
        %1373 = vmatmul.bf16.gmra.mxu0 %v731
        %v1374 = vpop.f32.mrf.mxu0
        %v1375 = vadd.f32 0.0, %v1374
        %v1376 = vpop.f32.mrf.mxu0
        %v1377 = vadd.f32 0.0, %v1376
        %1378 = vmatmul.bf16.gmra.mxu0 %v734
        %v1379 = vpop.f32.mrf.mxu0
        %v1380 = vadd.f32 0.0, %v1379
        %v1381 = vpop.f32.mrf.mxu0
        %v1382 = vadd.f32 0.0, %v1381
        %1383 = vdwg.mxu0
        %v1384 = vmul.f32 %v1365, %v1365
        %v1385 = vmul.f32 %v1367, %v1367
        %v1386 = vmul.f32 %v1370, %v1370
        %v1387 = vmul.f32 %v1372, %v1372
        %v1388 = vmul.f32 %v1375, %v1375
        %v1389 = vmul.f32 %v1377, %v1377
        %v1390 = vmul.f32 %v1380, %v1380
        %v1391 = vmul.f32 %v1382, %v1382
        %1392 = vadd.xlane.f32.xlu0 %v1384
        %v1393 = vpop.xlane.xlu0 %1392
        %1394 = vadd.xlane.f32.xlu0 %v1385
        %v1395 = vpop.xlane.xlu0 %1394
        %1396 = vadd.xlane.f32.xlu0 %v1386
        %v1397 = vpop.xlane.xlu0 %1396
        %1398 = vadd.xlane.f32.xlu0 %v1387
        %v1399 = vpop.xlane.xlu0 %1398
        %1400 = vadd.xlane.f32.xlu0 %v1388
        %v1401 = vpop.xlane.xlu0 %1400
        %1402 = vadd.xlane.f32.xlu0 %v1389
        %v1403 = vpop.xlane.xlu0 %1402
        %1404 = vadd.xlane.f32.xlu0 %v1390
        %v1405 = vpop.xlane.xlu0 %1404
        %1406 = vadd.xlane.f32.xlu0 %v1391
        %v1407 = vpop.xlane.xlu0 %1406
        %v1408 = vmax.f32 %v1393, 1e-30
        %v1409 = vmax.f32 %v1395, 1e-30
        %v1410 = vmax.f32 %v1397, 1e-30
        %v1411 = vmax.f32 %v1399, 1e-30
        %v1412 = vmax.f32 %v1401, 1e-30
        %v1413 = vmax.f32 %v1403, 1e-30
        %v1414 = vmax.f32 %v1405, 1e-30
        %v1415 = vmax.f32 %v1407, 1e-30
        %v1416 = vrsqrt.pop %v1408
        %v1417 = vmul.f32 %v1416, %v1408
        %v1418 = vmul.f32 %v1417, %v1416
        %v1419 = vmul.f32 0.5, %v1418
        %v1420 = vsub.f32 1.5, %v1419
        %v1421 = vmul.f32 %v1416, %v1420
        %vm1422 = vweird.f32 %v1408
        %vm1423 = vweird.f32 %v1416
        %vm1424 = vmor %vm1422, %vm1423
        %v1425 = vsel %vm1424, %v1416, %v1421
        %v1426 = vrsqrt.pop %v1409
        %v1427 = vmul.f32 %v1426, %v1409
        %v1428 = vmul.f32 %v1427, %v1426
        %v1429 = vmul.f32 0.5, %v1428
        %v1430 = vsub.f32 1.5, %v1429
        %v1431 = vmul.f32 %v1426, %v1430
        %vm1432 = vweird.f32 %v1409
        %vm1433 = vweird.f32 %v1426
        %vm1434 = vmor %vm1432, %vm1433
        %v1435 = vsel %vm1434, %v1426, %v1431
        %v1436 = vrsqrt.pop %v1410
        %v1437 = vmul.f32 %v1436, %v1410
        %v1438 = vmul.f32 %v1437, %v1436
        %v1439 = vmul.f32 0.5, %v1438
        %v1440 = vsub.f32 1.5, %v1439
        %v1441 = vmul.f32 %v1436, %v1440
        %vm1442 = vweird.f32 %v1410
        %vm1443 = vweird.f32 %v1436
        %vm1444 = vmor %vm1442, %vm1443
        %v1445 = vsel %vm1444, %v1436, %v1441
        %v1446 = vrsqrt.pop %v1411
        %v1447 = vmul.f32 %v1446, %v1411
        %v1448 = vmul.f32 %v1447, %v1446
        %v1449 = vmul.f32 0.5, %v1448
        %v1450 = vsub.f32 1.5, %v1449
        %v1451 = vmul.f32 %v1446, %v1450
        %vm1452 = vweird.f32 %v1411
        %vm1453 = vweird.f32 %v1446
        %vm1454 = vmor %vm1452, %vm1453
        %v1455 = vsel %vm1454, %v1446, %v1451
        %v1456 = vrsqrt.pop %v1412
        %v1457 = vmul.f32 %v1456, %v1412
        %v1458 = vmul.f32 %v1457, %v1456
        %v1459 = vmul.f32 0.5, %v1458
        %v1460 = vsub.f32 1.5, %v1459
        %v1461 = vmul.f32 %v1456, %v1460
        %vm1462 = vweird.f32 %v1412
        %vm1463 = vweird.f32 %v1456
        %vm1464 = vmor %vm1462, %vm1463
        %v1465 = vsel %vm1464, %v1456, %v1461
        %v1466 = vrsqrt.pop %v1413
        %v1467 = vmul.f32 %v1466, %v1413
        %v1468 = vmul.f32 %v1467, %v1466
        %v1469 = vmul.f32 0.5, %v1468
        %v1470 = vsub.f32 1.5, %v1469
        %v1471 = vmul.f32 %v1466, %v1470
        %vm1472 = vweird.f32 %v1413
        %vm1473 = vweird.f32 %v1466
        %vm1474 = vmor %vm1472, %vm1473
        %v1475 = vsel %vm1474, %v1466, %v1471
        %v1476 = vrsqrt.pop %v1414
        %v1477 = vmul.f32 %v1476, %v1414
        %v1478 = vmul.f32 %v1477, %v1476
        %v1479 = vmul.f32 0.5, %v1478
        %v1480 = vsub.f32 1.5, %v1479
        %v1481 = vmul.f32 %v1476, %v1480
        %vm1482 = vweird.f32 %v1414
        %vm1483 = vweird.f32 %v1476
        %vm1484 = vmor %vm1482, %vm1483
        %v1485 = vsel %vm1484, %v1476, %v1481
        %v1486 = vrsqrt.pop %v1415
        %v1487 = vmul.f32 %v1486, %v1415
        %v1488 = vmul.f32 %v1487, %v1486
        %v1489 = vmul.f32 0.5, %v1488
        %v1490 = vsub.f32 1.5, %v1489
        %v1491 = vmul.f32 %v1486, %v1490
        %vm1492 = vweird.f32 %v1415
        %vm1493 = vweird.f32 %v1486
        %vm1494 = vmor %vm1492, %vm1493
        %v1495 = vsel %vm1494, %v1486, %v1491
        %v1496 = vmul.f32 %v1425, 3.106303
        %v1497 = vmul.f32 %v1435, 3.106303
        %v1498 = vmul.f32 %v1445, 3.106303
        %v1499 = vmul.f32 %v1455, 3.106303
        %v1500 = vmul.f32 %v1465, 3.106303
        %v1501 = vmul.f32 %v1475, 3.106303
        %v1502 = vmul.f32 %v1485, 3.106303
        %v1503 = vmul.f32 %v1495, 3.106303
        %v1504 = vmin.f32 %v1496, 1.0
        %v1505 = vmin.f32 %v1497, 1.0
        %v1506 = vmin.f32 %v1498, 1.0
        %v1507 = vmin.f32 %v1499, 1.0
        %v1508 = vmin.f32 %v1500, 1.0
        %v1509 = vmin.f32 %v1501, 1.0
        %v1510 = vmin.f32 %v1502, 1.0
        %v1511 = vmin.f32 %v1503, 1.0
        %v1512 = vmax.f32 %v1365, 0.0
        %v1513 = vmax.f32 %v1367, 0.0
        %v1514 = vmax.f32 %v1370, 0.0
        %v1515 = vmax.f32 %v1372, 0.0
        %v1516 = vmax.f32 %v1375, 0.0
        %v1517 = vmax.f32 %v1377, 0.0
        %v1518 = vmax.f32 %v1380, 0.0
        %v1519 = vmax.f32 %v1382, 0.0
        %v1520 = vmul.f32 %v1512, %v1512
        %v1521 = vmul.f32 %v1513, %v1513
        %v1522 = vmul.f32 %v1514, %v1514
        %v1523 = vmul.f32 %v1515, %v1515
        %v1524 = vmul.f32 %v1516, %v1516
        %v1525 = vmul.f32 %v1517, %v1517
        %v1526 = vmul.f32 %v1518, %v1518
        %v1527 = vmul.f32 %v1519, %v1519
        %1528 = vadd.xlane.f32.xlu0 %v1520
        %v1529 = vpop.xlane.xlu0 %1528
        %1530 = vadd.xlane.f32.xlu0 %v1521
        %v1531 = vpop.xlane.xlu0 %1530
        %1532 = vadd.xlane.f32.xlu0 %v1522
        %v1533 = vpop.xlane.xlu0 %1532
        %1534 = vadd.xlane.f32.xlu0 %v1523
        %v1535 = vpop.xlane.xlu0 %1534
        %1536 = vadd.xlane.f32.xlu0 %v1524
        %v1537 = vpop.xlane.xlu0 %1536
        %1538 = vadd.xlane.f32.xlu0 %v1525
        %v1539 = vpop.xlane.xlu0 %1538
        %1540 = vadd.xlane.f32.xlu0 %v1526
        %v1541 = vpop.xlane.xlu0 %1540
        %1542 = vadd.xlane.f32.xlu0 %v1527
        %v1543 = vpop.xlane.xlu0 %1542
        %v1544 = vmax.f32 %v1529, 1e-30
        %v1545 = vmax.f32 %v1531, 1e-30
        %v1546 = vmax.f32 %v1533, 1e-30
        %v1547 = vmax.f32 %v1535, 1e-30
        %v1548 = vmax.f32 %v1537, 1e-30
        %v1549 = vmax.f32 %v1539, 1e-30
        %v1550 = vmax.f32 %v1541, 1e-30
        %v1551 = vmax.f32 %v1543, 1e-30
        %v1552 = vrsqrt.pop %v1544
        %v1553 = vmul.f32 %v1552, %v1544
        %v1554 = vmul.f32 %v1553, %v1552
        %v1555 = vmul.f32 0.5, %v1554
        %v1556 = vsub.f32 1.5, %v1555
        %v1557 = vmul.f32 %v1552, %v1556
        %vm1558 = vweird.f32 %v1544
        %vm1559 = vweird.f32 %v1552
        %vm1560 = vmor %vm1558, %vm1559
        %v1561 = vsel %vm1560, %v1552, %v1557
        %v1562 = vrsqrt.pop %v1545
        %v1563 = vmul.f32 %v1562, %v1545
        %v1564 = vmul.f32 %v1563, %v1562
        %v1565 = vmul.f32 0.5, %v1564
        %v1566 = vsub.f32 1.5, %v1565
        %v1567 = vmul.f32 %v1562, %v1566
        %vm1568 = vweird.f32 %v1545
        %vm1569 = vweird.f32 %v1562
        %vm1570 = vmor %vm1568, %vm1569
        %v1571 = vsel %vm1570, %v1562, %v1567
        %v1572 = vrsqrt.pop %v1546
        %v1573 = vmul.f32 %v1572, %v1546
        %v1574 = vmul.f32 %v1573, %v1572
        %v1575 = vmul.f32 0.5, %v1574
        %v1576 = vsub.f32 1.5, %v1575
        %v1577 = vmul.f32 %v1572, %v1576
        %vm1578 = vweird.f32 %v1546
        %vm1579 = vweird.f32 %v1572
        %vm1580 = vmor %vm1578, %vm1579
        %v1581 = vsel %vm1580, %v1572, %v1577
        %v1582 = vrsqrt.pop %v1547
        %v1583 = vmul.f32 %v1582, %v1547
        %v1584 = vmul.f32 %v1583, %v1582
        %v1585 = vmul.f32 0.5, %v1584
        %v1586 = vsub.f32 1.5, %v1585
        %v1587 = vmul.f32 %v1582, %v1586
        %vm1588 = vweird.f32 %v1547
        %vm1589 = vweird.f32 %v1582
        %vm1590 = vmor %vm1588, %vm1589
        %v1591 = vsel %vm1590, %v1582, %v1587
        %v1592 = vrsqrt.pop %v1548
        %v1593 = vmul.f32 %v1592, %v1548
        %v1594 = vmul.f32 %v1593, %v1592
        %v1595 = vmul.f32 0.5, %v1594
        %v1596 = vsub.f32 1.5, %v1595
        %v1597 = vmul.f32 %v1592, %v1596
        %vm1598 = vweird.f32 %v1548
        %vm1599 = vweird.f32 %v1592
        %vm1600 = vmor %vm1598, %vm1599
        %v1601 = vsel %vm1600, %v1592, %v1597
        %v1602 = vrsqrt.pop %v1549
        %v1603 = vmul.f32 %v1602, %v1549
        %v1604 = vmul.f32 %v1603, %v1602
        %v1605 = vmul.f32 0.5, %v1604
        %v1606 = vsub.f32 1.5, %v1605
        %v1607 = vmul.f32 %v1602, %v1606
        %vm1608 = vweird.f32 %v1549
        %vm1609 = vweird.f32 %v1602
        %vm1610 = vmor %vm1608, %vm1609
        %v1611 = vsel %vm1610, %v1602, %v1607
        %v1612 = vrsqrt.pop %v1550
        %v1613 = vmul.f32 %v1612, %v1550
        %v1614 = vmul.f32 %v1613, %v1612
        %v1615 = vmul.f32 0.5, %v1614
        %v1616 = vsub.f32 1.5, %v1615
        %v1617 = vmul.f32 %v1612, %v1616
        %vm1618 = vweird.f32 %v1550
        %vm1619 = vweird.f32 %v1612
        %vm1620 = vmor %vm1618, %vm1619
        %v1621 = vsel %vm1620, %v1612, %v1617
        %v1622 = vrsqrt.pop %v1551
        %v1623 = vmul.f32 %v1622, %v1551
        %v1624 = vmul.f32 %v1623, %v1622
        %v1625 = vmul.f32 0.5, %v1624
        %v1626 = vsub.f32 1.5, %v1625
        %v1627 = vmul.f32 %v1622, %v1626
        %vm1628 = vweird.f32 %v1551
        %vm1629 = vweird.f32 %v1622
        %vm1630 = vmor %vm1628, %vm1629
        %v1631 = vsel %vm1630, %v1622, %v1627
        %v1632 = vmul.f32 %v1544, %v1561
        %v1633 = vmul.f32 %v1545, %v1571
        %v1634 = vmul.f32 %v1546, %v1581
        %v1635 = vmul.f32 %v1547, %v1591
        %v1636 = vmul.f32 %v1548, %v1601
        %v1637 = vmul.f32 %v1549, %v1611
        %v1638 = vmul.f32 %v1550, %v1621
        %v1639 = vmul.f32 %v1551, %v1631
        %v1640 = vmul.f32 %v1504, %v1632
        %v1641 = vmul.f32 %v1505, %v1633
        %v1642 = vmul.f32 %v1506, %v1634
        %v1643 = vmul.f32 %v1507, %v1635
        %v1644 = vmul.f32 %v1508, %v1636
        %v1645 = vmul.f32 %v1509, %v1637
        %v1646 = vmul.f32 %v1510, %v1638
        %v1647 = vmul.f32 %v1511, %v1639
        %v1648 = vtanh.pop %v1640
        %v1649 = vtanh.pop %v1641
        %v1650 = vtanh.pop %v1642
        %v1651 = vtanh.pop %v1643
        %v1652 = vtanh.pop %v1644
        %v1653 = vtanh.pop %v1645
        %v1654 = vtanh.pop %v1646
        %v1655 = vtanh.pop %v1647
        %v1656 = vmin.f32 %v1648, 0.996
        %v1657 = vmin.f32 %v1649, 0.996
        %v1658 = vmin.f32 %v1650, 0.996
        %v1659 = vmin.f32 %v1651, 0.996
        %v1660 = vmin.f32 %v1652, 0.996
        %v1661 = vmin.f32 %v1653, 0.996
        %v1662 = vmin.f32 %v1654, 0.996
        %v1663 = vmin.f32 %v1655, 0.996
        %v1664 = vmul.f32 %v1656, %v1561
        %v1665 = vmul.f32 %v1657, %v1571
        %v1666 = vmul.f32 %v1658, %v1581
        %v1667 = vmul.f32 %v1659, %v1591
        %v1668 = vmul.f32 %v1660, %v1601
        %v1669 = vmul.f32 %v1661, %v1611
        %v1670 = vmul.f32 %v1662, %v1621
        %v1671 = vmul.f32 %v1663, %v1631
        %v1672 = vmul.f32 %v1664, %v1512
        %v1673 = vmul.f32 %v1665, %v1513
        %v1674 = vmul.f32 %v1666, %v1514
        %v1675 = vmul.f32 %v1667, %v1515
        %v1676 = vmul.f32 %v1668, %v1516
        %v1677 = vmul.f32 %v1669, %v1517
        %v1678 = vmul.f32 %v1670, %v1518
        %v1679 = vmul.f32 %v1671, %v1519
        %s1680 = scalar_lea.vmem [#allocation7], 128
        %v1681 = vld [vmem:[%s1680] sm:$0xf]
        %v1682 = vld [vmem:[%s1680 + $0x4] sm:$0xf]
        %v1683 = vld [vmem:[%s1680 + $0x8] sm:$0xf]
        %v1684 = vld [vmem:[%s1680 + $0xc] sm:$0xf]
        %v1685 = vld [vmem:[%s1680 + $0x10] sm:$0xf]
        %v1686 = vld [vmem:[%s1680 + $0x14] sm:$0xf]
        %v1687 = vld [vmem:[%s1680 + $0x18] sm:$0xf]
        %v1688 = vld [vmem:[%s1680 + $0x1c] sm:$0xf]
        %v1689 = vld [vmem:[%s1680 + $0x20] sm:$0xf]
        %v1690 = vld [vmem:[%s1680 + $0x24] sm:$0xf]
        %v1691 = vld [vmem:[%s1680 + $0x28] sm:$0xf]
        %v1692 = vld [vmem:[%s1680 + $0x2c] sm:$0xf]
        %v1693 = vld [vmem:[%s1680 + $0x30] sm:$0xf]
        %v1694 = vld [vmem:[%s1680 + $0x34] sm:$0xf]
        %v1695 = vld [vmem:[%s1680 + $0x38] sm:$0xf]
        %v1696 = vld [vmem:[%s1680 + $0x3c] sm:$0xf]
        %v1697 = vmul.f32 %v1672, %v1672
        %v1698 = vmul.f32 %v1673, %v1673
        %v1699 = vmul.f32 %v1674, %v1674
        %v1700 = vmul.f32 %v1675, %v1675
        %v1701 = vmul.f32 %v1676, %v1676
        %v1702 = vmul.f32 %v1677, %v1677
        %v1703 = vmul.f32 %v1678, %v1678
        %v1704 = vmul.f32 %v1679, %v1679
        %1705 = vadd.xlane.f32.xlu0 %v1697
        %v1706 = vpop.xlane.xlu0 %1705
        %1707 = vadd.xlane.f32.xlu0 %v1698
        %v1708 = vpop.xlane.xlu0 %1707
        %1709 = vadd.xlane.f32.xlu0 %v1699
        %v1710 = vpop.xlane.xlu0 %1709
        %1711 = vadd.xlane.f32.xlu0 %v1700
        %v1712 = vpop.xlane.xlu0 %1711
        %1713 = vadd.xlane.f32.xlu0 %v1701
        %v1714 = vpop.xlane.xlu0 %1713
        %1715 = vadd.xlane.f32.xlu0 %v1702
        %v1716 = vpop.xlane.xlu0 %1715
        %1717 = vadd.xlane.f32.xlu0 %v1703
        %v1718 = vpop.xlane.xlu0 %1717
        %1719 = vadd.xlane.f32.xlu0 %v1704
        %v1720 = vpop.xlane.xlu0 %1719
        %v1721 = vmax.f32 %v1706, 1e-30
        %v1722 = vmax.f32 %v1708, 1e-30
        %v1723 = vmax.f32 %v1710, 1e-30
        %v1724 = vmax.f32 %v1712, 1e-30
        %v1725 = vmax.f32 %v1714, 1e-30
        %v1726 = vmax.f32 %v1716, 1e-30
        %v1727 = vmax.f32 %v1718, 1e-30
        %v1728 = vmax.f32 %v1720, 1e-30
        %v1729 = vrsqrt.pop %v1721
        %v1730 = vmul.f32 %v1729, %v1721
        %v1731 = vmul.f32 %v1730, %v1729
        %v1732 = vmul.f32 0.5, %v1731
        %v1733 = vsub.f32 1.5, %v1732
        %v1734 = vmul.f32 %v1729, %v1733
        %vm1735 = vweird.f32 %v1721
        %vm1736 = vweird.f32 %v1729
        %vm1737 = vmor %vm1735, %vm1736
        %v1738 = vsel %vm1737, %v1729, %v1734
        %v1739 = vrsqrt.pop %v1722
        %v1740 = vmul.f32 %v1739, %v1722
        %v1741 = vmul.f32 %v1740, %v1739
        %v1742 = vmul.f32 0.5, %v1741
        %v1743 = vsub.f32 1.5, %v1742
        %v1744 = vmul.f32 %v1739, %v1743
        %vm1745 = vweird.f32 %v1722
        %vm1746 = vweird.f32 %v1739
        %vm1747 = vmor %vm1745, %vm1746
        %v1748 = vsel %vm1747, %v1739, %v1744
        %v1749 = vrsqrt.pop %v1723
        %v1750 = vmul.f32 %v1749, %v1723
        %v1751 = vmul.f32 %v1750, %v1749
        %v1752 = vmul.f32 0.5, %v1751
        %v1753 = vsub.f32 1.5, %v1752
        %v1754 = vmul.f32 %v1749, %v1753
        %vm1755 = vweird.f32 %v1723
        %vm1756 = vweird.f32 %v1749
        %vm1757 = vmor %vm1755, %vm1756
        %v1758 = vsel %vm1757, %v1749, %v1754
        %v1759 = vrsqrt.pop %v1724
        %v1760 = vmul.f32 %v1759, %v1724
        %v1761 = vmul.f32 %v1760, %v1759
        %v1762 = vmul.f32 0.5, %v1761
        %v1763 = vsub.f32 1.5, %v1762
        %v1764 = vmul.f32 %v1759, %v1763
        %vm1765 = vweird.f32 %v1724
        %vm1766 = vweird.f32 %v1759
        %vm1767 = vmor %vm1765, %vm1766
        %v1768 = vsel %vm1767, %v1759, %v1764
        %v1769 = vrsqrt.pop %v1725
        %v1770 = vmul.f32 %v1769, %v1725
        %v1771 = vmul.f32 %v1770, %v1769
        %v1772 = vmul.f32 0.5, %v1771
        %v1773 = vsub.f32 1.5, %v1772
        %v1774 = vmul.f32 %v1769, %v1773
        %vm1775 = vweird.f32 %v1725
        %vm1776 = vweird.f32 %v1769
        %vm1777 = vmor %vm1775, %vm1776
        %v1778 = vsel %vm1777, %v1769, %v1774
        %v1779 = vrsqrt.pop %v1726
        %v1780 = vmul.f32 %v1779, %v1726
        %v1781 = vmul.f32 %v1780, %v1779
        %v1782 = vmul.f32 0.5, %v1781
        %v1783 = vsub.f32 1.5, %v1782
        %v1784 = vmul.f32 %v1779, %v1783
        %vm1785 = vweird.f32 %v1726
        %vm1786 = vweird.f32 %v1779
        %vm1787 = vmor %vm1785, %vm1786
        %v1788 = vsel %vm1787, %v1779, %v1784
        %v1789 = vrsqrt.pop %v1727
        %v1790 = vmul.f32 %v1789, %v1727
        %v1791 = vmul.f32 %v1790, %v1789
        %v1792 = vmul.f32 0.5, %v1791
        %v1793 = vsub.f32 1.5, %v1792
        %v1794 = vmul.f32 %v1789, %v1793
        %vm1795 = vweird.f32 %v1727
        %vm1796 = vweird.f32 %v1789
        %vm1797 = vmor %vm1795, %vm1796
        %v1798 = vsel %vm1797, %v1789, %v1794
        %v1799 = vrsqrt.pop %v1728
        %v1800 = vmul.f32 %v1799, %v1728
        %v1801 = vmul.f32 %v1800, %v1799
        %v1802 = vmul.f32 0.5, %v1801
        %v1803 = vsub.f32 1.5, %v1802
        %v1804 = vmul.f32 %v1799, %v1803
        %vm1805 = vweird.f32 %v1728
        %vm1806 = vweird.f32 %v1799
        %vm1807 = vmor %vm1805, %vm1806
        %v1808 = vsel %vm1807, %v1799, %v1804
        %v1809 = vmul.f32 %v1721, %v1738
        %v1810 = vmul.f32 %v1722, %v1748
        %v1811 = vmul.f32 %v1723, %v1758
        %v1812 = vmul.f32 %v1724, %v1768
        %v1813 = vmul.f32 %v1725, %v1778
        %v1814 = vmul.f32 %v1726, %v1788
        %v1815 = vmul.f32 %v1727, %v1798
        %v1816 = vmul.f32 %v1728, %v1808
        %v1817 = vmin.f32 %v1809, 0.99999
        %v1818 = vmin.f32 %v1810, 0.99999
        %v1819 = vmin.f32 %v1811, 0.99999
        %v1820 = vmin.f32 %v1812, 0.99999
        %v1821 = vmin.f32 %v1813, 0.99999
        %v1822 = vmin.f32 %v1814, 0.99999
        %v1823 = vmin.f32 %v1815, 0.99999
        %v1824 = vmin.f32 %v1816, 0.99999
        %v1825 = vadd.f32 %v1817, 1.0
        %v1826 = vadd.f32 %v1818, 1.0
        %v1827 = vadd.f32 %v1819, 1.0
        %v1828 = vadd.f32 %v1820, 1.0
        %v1829 = vadd.f32 %v1821, 1.0
        %v1830 = vadd.f32 %v1822, 1.0
        %v1831 = vadd.f32 %v1823, 1.0
        %v1832 = vadd.f32 %v1824, 1.0
        %v1833 = vlog2.pop %v1825
        %v1834 = vmul.f32 %v1833, 0.6931472
        %v1835 = vlog2.pop %v1826
        %v1836 = vmul.f32 %v1835, 0.6931472
        %v1837 = vlog2.pop %v1827
        %v1838 = vmul.f32 %v1837, 0.6931472
        %v1839 = vlog2.pop %v1828
        %v1840 = vmul.f32 %v1839, 0.6931472
        %v1841 = vlog2.pop %v1829
        %v1842 = vmul.f32 %v1841, 0.6931472
        %v1843 = vlog2.pop %v1830
        %v1844 = vmul.f32 %v1843, 0.6931472
        %v1845 = vlog2.pop %v1831
        %v1846 = vmul.f32 %v1845, 0.6931472
        %v1847 = vlog2.pop %v1832
        %v1848 = vmul.f32 %v1847, 0.6931472
        %v1849 = vsub.f32 1.0, %v1817
        %v1850 = vsub.f32 1.0, %v1818
        %v1851 = vsub.f32 1.0, %v1819
        %v1852 = vsub.f32 1.0, %v1820
        %v1853 = vsub.f32 1.0, %v1821
        %v1854 = vsub.f32 1.0, %v1822
        %v1855 = vsub.f32 1.0, %v1823
        %v1856 = vsub.f32 1.0, %v1824
        %v1857 = vlog2.pop %v1849
        %v1858 = vmul.f32 %v1857, 0.6931472
        %v1859 = vlog2.pop %v1850
        %v1860 = vmul.f32 %v1859, 0.6931472
        %v1861 = vlog2.pop %v1851
        %v1862 = vmul.f32 %v1861, 0.6931472
        %v1863 = vlog2.pop %v1852
        %v1864 = vmul.f32 %v1863, 0.6931472
        %v1865 = vlog2.pop %v1853
        %v1866 = vmul.f32 %v1865, 0.6931472
        %v1867 = vlog2.pop %v1854
        %v1868 = vmul.f32 %v1867, 0.6931472
        %v1869 = vlog2.pop %v1855
        %v1870 = vmul.f32 %v1869, 0.6931472
        %v1871 = vlog2.pop %v1856
        %v1872 = vmul.f32 %v1871, 0.6931472
        %v1873 = vsub.f32 %v1834, %v1858
        %v1874 = vsub.f32 %v1836, %v1860
        %v1875 = vsub.f32 %v1838, %v1862
        %v1876 = vsub.f32 %v1840, %v1864
        %v1877 = vsub.f32 %v1842, %v1866
        %v1878 = vsub.f32 %v1844, %v1868
        %v1879 = vsub.f32 %v1846, %v1870
        %v1880 = vsub.f32 %v1848, %v1872
        %v1881 = vmul.f32 %v1873, 0.5
        %v1882 = vmul.f32 %v1874, 0.5
        %v1883 = vmul.f32 %v1875, 0.5
        %v1884 = vmul.f32 %v1876, 0.5
        %v1885 = vmul.f32 %v1877, 0.5
        %v1886 = vmul.f32 %v1878, 0.5
        %v1887 = vmul.f32 %v1879, 0.5
        %v1888 = vmul.f32 %v1880, 0.5
        %v1889 = vpack.c.bf16 %v1673, %v1672
        %v1890 = vpack.c.bf16 %v1675, %v1674
        %v1891 = vpack.c.bf16 %v1677, %v1676
        %v1892 = vpack.c.bf16 %v1679, %v1678
        %v1909 = vunpack.c.l.b16 %v1681
        %v1910 = vunpack.c.l.b16 %v1682
        %v1911 = vunpack.c.l.b16 %v1683
        %v1912 = vunpack.c.l.b16 %v1684
        %v1913 = vunpack.c.l.b16 %v1685
        %v1914 = vunpack.c.l.b16 %v1686
        %v1915 = vunpack.c.l.b16 %v1687
        %v1916 = vunpack.c.l.b16 %v1688
        %v1917 = vunpack.c.l.b16 %v1689
        %v1918 = vunpack.c.l.b16 %v1690
        %v1919 = vunpack.c.l.b16 %v1691
        %v1920 = vunpack.c.l.b16 %v1692
        %v1921 = vunpack.c.l.b16 %v1693
        %v1922 = vunpack.c.l.b16 %v1694
        %v1923 = vunpack.c.l.b16 %v1695
        %v1924 = vunpack.c.l.b16 %v1696
        %v1925 = vpack.c.b16 %v1910, %v1909
        %v1926 = vpack.c.b16 %v1912, %v1911
        %v1927 = vpack.c.b16 %v1914, %v1913
        %v1928 = vpack.c.b16 %v1916, %v1915
        %v1929 = vpack.c.b16 %v1918, %v1917
        %v1930 = vpack.c.b16 %v1920, %v1919
        %v1931 = vpack.c.b16 %v1922, %v1921
        %v1932 = vpack.c.b16 %v1924, %v1923
        %1941 = vmatpush.bf16.msra.mxu0 %v1932
        %1942 = vmatpush.bf16.msra.mxu0 %v1931
        %1943 = vmatpush.bf16.msra.mxu0 %v1930
        %1944 = vmatpush.bf16.msra.mxu0 %v1929
        %1945 = vmatpush.bf16.msra.mxu0 %v1928
        %1946 = vmatpush.bf16.msra.mxu0 %v1927
        %1947 = vmatpush.bf16.msra.mxu0 %v1926
        %1948 = vmatpush.bf16.msra.mxu0 %v1925
        %1949 = vmatmul.bf16.gmra.mxu0 %v1889
        %v1950 = vpop.f32.mrf.mxu0
        %v1951 = vadd.f32 0.0, %v1950
        %v1952 = vpop.f32.mrf.mxu0
        %v1953 = vadd.f32 0.0, %v1952
        %1954 = vmatmul.bf16.gmra.mxu0 %v1890
        %v1955 = vpop.f32.mrf.mxu0
        %v1956 = vadd.f32 0.0, %v1955
        %v1957 = vpop.f32.mrf.mxu0
        %v1958 = vadd.f32 0.0, %v1957
        %1959 = vmatmul.bf16.gmra.mxu0 %v1891
        %v1960 = vpop.f32.mrf.mxu0
        %v1961 = vadd.f32 0.0, %v1960
        %v1962 = vpop.f32.mrf.mxu0
        %v1963 = vadd.f32 0.0, %v1962
        %1964 = vmatmul.bf16.gmra.mxu0 %v1892
        %v1965 = vpop.f32.mrf.mxu0
        %v1966 = vadd.f32 0.0, %v1965
        %v1967 = vpop.f32.mrf.mxu0
        %v1968 = vadd.f32 0.0, %v1967
        %1969 = vdwg.mxu0
        %v1970 = vmul.f32 %v1951, %v1951
        %v1971 = vmul.f32 %v1953, %v1953
        %v1972 = vmul.f32 %v1956, %v1956
        %v1973 = vmul.f32 %v1958, %v1958
        %v1974 = vmul.f32 %v1961, %v1961
        %v1975 = vmul.f32 %v1963, %v1963
        %v1976 = vmul.f32 %v1966, %v1966
        %v1977 = vmul.f32 %v1968, %v1968
        %1978 = vadd.xlane.f32.xlu0 %v1970
        %v1979 = vpop.xlane.xlu0 %1978
        %1980 = vadd.xlane.f32.xlu0 %v1971
        %v1981 = vpop.xlane.xlu0 %1980
        %1982 = vadd.xlane.f32.xlu0 %v1972
        %v1983 = vpop.xlane.xlu0 %1982
        %1984 = vadd.xlane.f32.xlu0 %v1973
        %v1985 = vpop.xlane.xlu0 %1984
        %1986 = vadd.xlane.f32.xlu0 %v1974
        %v1987 = vpop.xlane.xlu0 %1986
        %1988 = vadd.xlane.f32.xlu0 %v1975
        %v1989 = vpop.xlane.xlu0 %1988
        %1990 = vadd.xlane.f32.xlu0 %v1976
        %v1991 = vpop.xlane.xlu0 %1990
        %1992 = vadd.xlane.f32.xlu0 %v1977
        %v1993 = vpop.xlane.xlu0 %1992
        %v1994 = vmax.f32 %v1979, 1e-30
        %v1995 = vmax.f32 %v1981, 1e-30
        %v1996 = vmax.f32 %v1983, 1e-30
        %v1997 = vmax.f32 %v1985, 1e-30
        %v1998 = vmax.f32 %v1987, 1e-30
        %v1999 = vmax.f32 %v1989, 1e-30
        %v2000 = vmax.f32 %v1991, 1e-30
        %v2001 = vmax.f32 %v1993, 1e-30
        %v2002 = vrsqrt.pop %v1994
        %v2003 = vmul.f32 %v2002, %v1994
        %v2004 = vmul.f32 %v2003, %v2002
        %v2005 = vmul.f32 0.5, %v2004
        %v2006 = vsub.f32 1.5, %v2005
        %v2007 = vmul.f32 %v2002, %v2006
        %vm2008 = vweird.f32 %v1994
        %vm2009 = vweird.f32 %v2002
        %vm2010 = vmor %vm2008, %vm2009
        %v2011 = vsel %vm2010, %v2002, %v2007
        %v2012 = vrsqrt.pop %v1995
        %v2013 = vmul.f32 %v2012, %v1995
        %v2014 = vmul.f32 %v2013, %v2012
        %v2015 = vmul.f32 0.5, %v2014
        %v2016 = vsub.f32 1.5, %v2015
        %v2017 = vmul.f32 %v2012, %v2016
        %vm2018 = vweird.f32 %v1995
        %vm2019 = vweird.f32 %v2012
        %vm2020 = vmor %vm2018, %vm2019
        %v2021 = vsel %vm2020, %v2012, %v2017
        %v2022 = vrsqrt.pop %v1996
        %v2023 = vmul.f32 %v2022, %v1996
        %v2024 = vmul.f32 %v2023, %v2022
        %v2025 = vmul.f32 0.5, %v2024
        %v2026 = vsub.f32 1.5, %v2025
        %v2027 = vmul.f32 %v2022, %v2026
        %vm2028 = vweird.f32 %v1996
        %vm2029 = vweird.f32 %v2022
        %vm2030 = vmor %vm2028, %vm2029
        %v2031 = vsel %vm2030, %v2022, %v2027
        %v2032 = vrsqrt.pop %v1997
        %v2033 = vmul.f32 %v2032, %v1997
        %v2034 = vmul.f32 %v2033, %v2032
        %v2035 = vmul.f32 0.5, %v2034
        %v2036 = vsub.f32 1.5, %v2035
        %v2037 = vmul.f32 %v2032, %v2036
        %vm2038 = vweird.f32 %v1997
        %vm2039 = vweird.f32 %v2032
        %vm2040 = vmor %vm2038, %vm2039
        %v2041 = vsel %vm2040, %v2032, %v2037
        %v2042 = vrsqrt.pop %v1998
        %v2043 = vmul.f32 %v2042, %v1998
        %v2044 = vmul.f32 %v2043, %v2042
        %v2045 = vmul.f32 0.5, %v2044
        %v2046 = vsub.f32 1.5, %v2045
        %v2047 = vmul.f32 %v2042, %v2046
        %vm2048 = vweird.f32 %v1998
        %vm2049 = vweird.f32 %v2042
        %vm2050 = vmor %vm2048, %vm2049
        %v2051 = vsel %vm2050, %v2042, %v2047
        %v2052 = vrsqrt.pop %v1999
        %v2053 = vmul.f32 %v2052, %v1999
        %v2054 = vmul.f32 %v2053, %v2052
        %v2055 = vmul.f32 0.5, %v2054
        %v2056 = vsub.f32 1.5, %v2055
        %v2057 = vmul.f32 %v2052, %v2056
        %vm2058 = vweird.f32 %v1999
        %vm2059 = vweird.f32 %v2052
        %vm2060 = vmor %vm2058, %vm2059
        %v2061 = vsel %vm2060, %v2052, %v2057
        %v2062 = vrsqrt.pop %v2000
        %v2063 = vmul.f32 %v2062, %v2000
        %v2064 = vmul.f32 %v2063, %v2062
        %v2065 = vmul.f32 0.5, %v2064
        %v2066 = vsub.f32 1.5, %v2065
        %v2067 = vmul.f32 %v2062, %v2066
        %vm2068 = vweird.f32 %v2000
        %vm2069 = vweird.f32 %v2062
        %vm2070 = vmor %vm2068, %vm2069
        %v2071 = vsel %vm2070, %v2062, %v2067
        %v2072 = vrsqrt.pop %v2001
        %v2073 = vmul.f32 %v2072, %v2001
        %v2074 = vmul.f32 %v2073, %v2072
        %v2075 = vmul.f32 0.5, %v2074
        %v2076 = vsub.f32 1.5, %v2075
        %v2077 = vmul.f32 %v2072, %v2076
        %vm2078 = vweird.f32 %v2001
        %vm2079 = vweird.f32 %v2072
        %vm2080 = vmor %vm2078, %vm2079
        %v2081 = vsel %vm2080, %v2072, %v2077
        %v2082 = vmul.f32 %v1881, %v1738
        %v2083 = vmul.f32 %v1882, %v1748
        %v2084 = vmul.f32 %v1883, %v1758
        %v2085 = vmul.f32 %v1884, %v1768
        %v2086 = vmul.f32 %v1885, %v1778
        %v2087 = vmul.f32 %v1886, %v1788
        %v2088 = vmul.f32 %v1887, %v1798
        %v2089 = vmul.f32 %v1888, %v1808
        %v2090 = vmul.f32 %v2011, 3.106303
        %v2091 = vmul.f32 %v2021, 3.106303
        %v2092 = vmul.f32 %v2031, 3.106303
        %v2093 = vmul.f32 %v2041, 3.106303
        %v2094 = vmul.f32 %v2051, 3.106303
        %v2095 = vmul.f32 %v2061, 3.106303
        %v2096 = vmul.f32 %v2071, 3.106303
        %v2097 = vmul.f32 %v2081, 3.106303
        %v2098 = vmin.f32 %v2082, %v2090
        %v2099 = vmin.f32 %v2083, %v2091
        %v2100 = vmin.f32 %v2084, %v2092
        %v2101 = vmin.f32 %v2085, %v2093
        %v2102 = vmin.f32 %v2086, %v2094
        %v2103 = vmin.f32 %v2087, %v2095
        %v2104 = vmin.f32 %v2088, %v2096
        %v2105 = vmin.f32 %v2089, %v2097
        %v2106 = vmul.f32 %v2098, %v1951
        %v2107 = vmul.f32 %v2099, %v1953
        %v2108 = vmul.f32 %v2100, %v1956
        %v2109 = vmul.f32 %v2101, %v1958
        %v2110 = vmul.f32 %v2102, %v1961
        %v2111 = vmul.f32 %v2103, %v1963
        %v2112 = vmul.f32 %v2104, %v1966
        %v2113 = vmul.f32 %v2105, %v1968
        %v2114 = vpack.c.bf16 %v2107, %v2106
        %v2115 = vpack.c.bf16 %v2109, %v2108
        %v2116 = vpack.c.bf16 %v2111, %v2110
        %v2117 = vpack.c.bf16 %v2113, %v2112
        %2118 = vmatpush.bf16.msra.mxu0 0
        %2119 = vmatpush.bf16.msra.mxu0 0
        %2120 = vmatpush.bf16.msra.mxu0 0
        %2121 = vmatpush.bf16.msra.mxu0 0
        %2122 = vmatpush.bf16.msra.mxu0 %v2117
        %2123 = vmatpush.bf16.msra.mxu0 %v2116
        %2124 = vmatpush.bf16.msra.mxu0 %v2115
        %2125 = vmatpush.bf16.msra.mxu0 %v2114
        %2126 = vmatmul.bf16.gmra.mxu0 %v725
        %v2127 = vpop.f32.mrf.mxu0
        %v2128 = vadd.f32 0.0, %v2127
        %v2129 = vpop.f32.mrf.mxu0
        %v2130 = vadd.f32 0.0, %v2129
        %2131 = vmatmul.bf16.gmra.mxu0 %v728
        %v2132 = vpop.f32.mrf.mxu0
        %v2133 = vadd.f32 0.0, %v2132
        %v2134 = vpop.f32.mrf.mxu0
        %v2135 = vadd.f32 0.0, %v2134
        %2136 = vmatmul.bf16.gmra.mxu0 %v731
        %v2137 = vpop.f32.mrf.mxu0
        %v2138 = vadd.f32 0.0, %v2137
        %v2139 = vpop.f32.mrf.mxu0
        %v2140 = vadd.f32 0.0, %v2139
        %2141 = vmatmul.bf16.gmra.mxu0 %v734
        %v2142 = vpop.f32.mrf.mxu0
        %v2143 = vadd.f32 0.0, %v2142
        %v2144 = vpop.f32.mrf.mxu0
        %v2145 = vadd.f32 0.0, %v2144
        %2146 = vdwg.mxu0
        %v2147 = vmul.f32 %v2128, %v2128
        %v2148 = vmul.f32 %v2130, %v2130
        %v2149 = vmul.f32 %v2133, %v2133
        %v2150 = vmul.f32 %v2135, %v2135
        %v2151 = vmul.f32 %v2138, %v2138
        %v2152 = vmul.f32 %v2140, %v2140
        %v2153 = vmul.f32 %v2143, %v2143
        %v2154 = vmul.f32 %v2145, %v2145
        %2155 = vadd.xlane.f32.xlu0 %v2147
        %v2156 = vpop.xlane.xlu0 %2155
        %2157 = vadd.xlane.f32.xlu0 %v2148
        %v2158 = vpop.xlane.xlu0 %2157
        %2159 = vadd.xlane.f32.xlu0 %v2149
        %v2160 = vpop.xlane.xlu0 %2159
        %2161 = vadd.xlane.f32.xlu0 %v2150
        %v2162 = vpop.xlane.xlu0 %2161
        %2163 = vadd.xlane.f32.xlu0 %v2151
        %v2164 = vpop.xlane.xlu0 %2163
        %2165 = vadd.xlane.f32.xlu0 %v2152
        %v2166 = vpop.xlane.xlu0 %2165
        %2167 = vadd.xlane.f32.xlu0 %v2153
        %v2168 = vpop.xlane.xlu0 %2167
        %2169 = vadd.xlane.f32.xlu0 %v2154
        %v2170 = vpop.xlane.xlu0 %2169
        %v2171 = vmax.f32 %v2156, 1e-30
        %v2172 = vmax.f32 %v2158, 1e-30
        %v2173 = vmax.f32 %v2160, 1e-30
        %v2174 = vmax.f32 %v2162, 1e-30
        %v2175 = vmax.f32 %v2164, 1e-30
        %v2176 = vmax.f32 %v2166, 1e-30
        %v2177 = vmax.f32 %v2168, 1e-30
        %v2178 = vmax.f32 %v2170, 1e-30
        %v2179 = vrsqrt.pop %v2171
        %v2180 = vmul.f32 %v2179, %v2171
        %v2181 = vmul.f32 %v2180, %v2179
        %v2182 = vmul.f32 0.5, %v2181
        %v2183 = vsub.f32 1.5, %v2182
        %v2184 = vmul.f32 %v2179, %v2183
        %vm2185 = vweird.f32 %v2171
        %vm2186 = vweird.f32 %v2179
        %vm2187 = vmor %vm2185, %vm2186
        %v2188 = vsel %vm2187, %v2179, %v2184
        %v2189 = vrsqrt.pop %v2172
        %v2190 = vmul.f32 %v2189, %v2172
        %v2191 = vmul.f32 %v2190, %v2189
        %v2192 = vmul.f32 0.5, %v2191
        %v2193 = vsub.f32 1.5, %v2192
        %v2194 = vmul.f32 %v2189, %v2193
        %vm2195 = vweird.f32 %v2172
        %vm2196 = vweird.f32 %v2189
        %vm2197 = vmor %vm2195, %vm2196
        %v2198 = vsel %vm2197, %v2189, %v2194
        %v2199 = vrsqrt.pop %v2173
        %v2200 = vmul.f32 %v2199, %v2173
        %v2201 = vmul.f32 %v2200, %v2199
        %v2202 = vmul.f32 0.5, %v2201
        %v2203 = vsub.f32 1.5, %v2202
        %v2204 = vmul.f32 %v2199, %v2203
        %vm2205 = vweird.f32 %v2173
        %vm2206 = vweird.f32 %v2199
        %vm2207 = vmor %vm2205, %vm2206
        %v2208 = vsel %vm2207, %v2199, %v2204
        %v2209 = vrsqrt.pop %v2174
        %v2210 = vmul.f32 %v2209, %v2174
        %v2211 = vmul.f32 %v2210, %v2209
        %v2212 = vmul.f32 0.5, %v2211
        %v2213 = vsub.f32 1.5, %v2212
        %v2214 = vmul.f32 %v2209, %v2213
        %vm2215 = vweird.f32 %v2174
        %vm2216 = vweird.f32 %v2209
        %vm2217 = vmor %vm2215, %vm2216
        %v2218 = vsel %vm2217, %v2209, %v2214
        %v2219 = vrsqrt.pop %v2175
        %v2220 = vmul.f32 %v2219, %v2175
        %v2221 = vmul.f32 %v2220, %v2219
        %v2222 = vmul.f32 0.5, %v2221
        %v2223 = vsub.f32 1.5, %v2222
        %v2224 = vmul.f32 %v2219, %v2223
        %vm2225 = vweird.f32 %v2175
        %vm2226 = vweird.f32 %v2219
        %vm2227 = vmor %vm2225, %vm2226
        %v2228 = vsel %vm2227, %v2219, %v2224
        %v2229 = vrsqrt.pop %v2176
        %v2230 = vmul.f32 %v2229, %v2176
        %v2231 = vmul.f32 %v2230, %v2229
        %v2232 = vmul.f32 0.5, %v2231
        %v2233 = vsub.f32 1.5, %v2232
        %v2234 = vmul.f32 %v2229, %v2233
        %vm2235 = vweird.f32 %v2176
        %vm2236 = vweird.f32 %v2229
        %vm2237 = vmor %vm2235, %vm2236
        %v2238 = vsel %vm2237, %v2229, %v2234
        %v2239 = vrsqrt.pop %v2177
        %v2240 = vmul.f32 %v2239, %v2177
        %v2241 = vmul.f32 %v2240, %v2239
        %v2242 = vmul.f32 0.5, %v2241
        %v2243 = vsub.f32 1.5, %v2242
        %v2244 = vmul.f32 %v2239, %v2243
        %vm2245 = vweird.f32 %v2177
        %vm2246 = vweird.f32 %v2239
        %vm2247 = vmor %vm2245, %vm2246
        %v2248 = vsel %vm2247, %v2239, %v2244
        %v2249 = vrsqrt.pop %v2178
        %v2250 = vmul.f32 %v2249, %v2178
        %v2251 = vmul.f32 %v2250, %v2249
        %v2252 = vmul.f32 0.5, %v2251
        %v2253 = vsub.f32 1.5, %v2252
        %v2254 = vmul.f32 %v2249, %v2253
        %vm2255 = vweird.f32 %v2178
        %vm2256 = vweird.f32 %v2249
        %vm2257 = vmor %vm2255, %vm2256
        %v2258 = vsel %vm2257, %v2249, %v2254
        %v2259 = vmul.f32 %v2188, 3.106303
        %v2260 = vmul.f32 %v2198, 3.106303
        %v2261 = vmul.f32 %v2208, 3.106303
        %v2262 = vmul.f32 %v2218, 3.106303
        %v2263 = vmul.f32 %v2228, 3.106303
        %v2264 = vmul.f32 %v2238, 3.106303
        %v2265 = vmul.f32 %v2248, 3.106303
        %v2266 = vmul.f32 %v2258, 3.106303
        %v2267 = vmin.f32 %v2259, 1.0
        %v2268 = vmin.f32 %v2260, 1.0
        %v2269 = vmin.f32 %v2261, 1.0
        %v2270 = vmin.f32 %v2262, 1.0
        %v2271 = vmin.f32 %v2263, 1.0
        %v2272 = vmin.f32 %v2264, 1.0
        %v2273 = vmin.f32 %v2265, 1.0
        %v2274 = vmin.f32 %v2266, 1.0
        %v2275 = vmax.f32 %v2128, 0.0
        %v2276 = vmax.f32 %v2130, 0.0
        %v2277 = vmax.f32 %v2133, 0.0
        %v2278 = vmax.f32 %v2135, 0.0
        %v2279 = vmax.f32 %v2138, 0.0
        %v2280 = vmax.f32 %v2140, 0.0
        %v2281 = vmax.f32 %v2143, 0.0
        %v2282 = vmax.f32 %v2145, 0.0
        %v2283 = vmul.f32 %v2275, %v2275
        %v2284 = vmul.f32 %v2276, %v2276
        %v2285 = vmul.f32 %v2277, %v2277
        %v2286 = vmul.f32 %v2278, %v2278
        %v2287 = vmul.f32 %v2279, %v2279
        %v2288 = vmul.f32 %v2280, %v2280
        %v2289 = vmul.f32 %v2281, %v2281
        %v2290 = vmul.f32 %v2282, %v2282
        %2291 = vadd.xlane.f32.xlu0 %v2283
        %v2292 = vpop.xlane.xlu0 %2291
        %2293 = vadd.xlane.f32.xlu0 %v2284
        %v2294 = vpop.xlane.xlu0 %2293
        %2295 = vadd.xlane.f32.xlu0 %v2285
        %v2296 = vpop.xlane.xlu0 %2295
        %2297 = vadd.xlane.f32.xlu0 %v2286
        %v2298 = vpop.xlane.xlu0 %2297
        %2299 = vadd.xlane.f32.xlu0 %v2287
        %v2300 = vpop.xlane.xlu0 %2299
        %2301 = vadd.xlane.f32.xlu0 %v2288
        %v2302 = vpop.xlane.xlu0 %2301
        %2303 = vadd.xlane.f32.xlu0 %v2289
        %v2304 = vpop.xlane.xlu0 %2303
        %2305 = vadd.xlane.f32.xlu0 %v2290
        %v2306 = vpop.xlane.xlu0 %2305
        %v2307 = vmax.f32 %v2292, 1e-30
        %v2308 = vmax.f32 %v2294, 1e-30
        %v2309 = vmax.f32 %v2296, 1e-30
        %v2310 = vmax.f32 %v2298, 1e-30
        %v2311 = vmax.f32 %v2300, 1e-30
        %v2312 = vmax.f32 %v2302, 1e-30
        %v2313 = vmax.f32 %v2304, 1e-30
        %v2314 = vmax.f32 %v2306, 1e-30
        %v2315 = vrsqrt.pop %v2307
        %v2316 = vmul.f32 %v2315, %v2307
        %v2317 = vmul.f32 %v2316, %v2315
        %v2318 = vmul.f32 0.5, %v2317
        %v2319 = vsub.f32 1.5, %v2318
        %v2320 = vmul.f32 %v2315, %v2319
        %vm2321 = vweird.f32 %v2307
        %vm2322 = vweird.f32 %v2315
        %vm2323 = vmor %vm2321, %vm2322
        %v2324 = vsel %vm2323, %v2315, %v2320
        %v2325 = vrsqrt.pop %v2308
        %v2326 = vmul.f32 %v2325, %v2308
        %v2327 = vmul.f32 %v2326, %v2325
        %v2328 = vmul.f32 0.5, %v2327
        %v2329 = vsub.f32 1.5, %v2328
        %v2330 = vmul.f32 %v2325, %v2329
        %vm2331 = vweird.f32 %v2308
        %vm2332 = vweird.f32 %v2325
        %vm2333 = vmor %vm2331, %vm2332
        %v2334 = vsel %vm2333, %v2325, %v2330
        %v2335 = vrsqrt.pop %v2309
        %v2336 = vmul.f32 %v2335, %v2309
        %v2337 = vmul.f32 %v2336, %v2335
        %v2338 = vmul.f32 0.5, %v2337
        %v2339 = vsub.f32 1.5, %v2338
        %v2340 = vmul.f32 %v2335, %v2339
        %vm2341 = vweird.f32 %v2309
        %vm2342 = vweird.f32 %v2335
        %vm2343 = vmor %vm2341, %vm2342
        %v2344 = vsel %vm2343, %v2335, %v2340
        %v2345 = vrsqrt.pop %v2310
        %v2346 = vmul.f32 %v2345, %v2310
        %v2347 = vmul.f32 %v2346, %v2345
        %v2348 = vmul.f32 0.5, %v2347
        %v2349 = vsub.f32 1.5, %v2348
        %v2350 = vmul.f32 %v2345, %v2349
        %vm2351 = vweird.f32 %v2310
        %vm2352 = vweird.f32 %v2345
        %vm2353 = vmor %vm2351, %vm2352
        %v2354 = vsel %vm2353, %v2345, %v2350
        %v2355 = vrsqrt.pop %v2311
        %v2356 = vmul.f32 %v2355, %v2311
        %v2357 = vmul.f32 %v2356, %v2355
        %v2358 = vmul.f32 0.5, %v2357
        %v2359 = vsub.f32 1.5, %v2358
        %v2360 = vmul.f32 %v2355, %v2359
        %vm2361 = vweird.f32 %v2311
        %vm2362 = vweird.f32 %v2355
        %vm2363 = vmor %vm2361, %vm2362
        %v2364 = vsel %vm2363, %v2355, %v2360
        %v2365 = vrsqrt.pop %v2312
        %v2366 = vmul.f32 %v2365, %v2312
        %v2367 = vmul.f32 %v2366, %v2365
        %v2368 = vmul.f32 0.5, %v2367
        %v2369 = vsub.f32 1.5, %v2368
        %v2370 = vmul.f32 %v2365, %v2369
        %vm2371 = vweird.f32 %v2312
        %vm2372 = vweird.f32 %v2365
        %vm2373 = vmor %vm2371, %vm2372
        %v2374 = vsel %vm2373, %v2365, %v2370
        %v2375 = vrsqrt.pop %v2313
        %v2376 = vmul.f32 %v2375, %v2313
        %v2377 = vmul.f32 %v2376, %v2375
        %v2378 = vmul.f32 0.5, %v2377
        %v2379 = vsub.f32 1.5, %v2378
        %v2380 = vmul.f32 %v2375, %v2379
        %vm2381 = vweird.f32 %v2313
        %vm2382 = vweird.f32 %v2375
        %vm2383 = vmor %vm2381, %vm2382
        %v2384 = vsel %vm2383, %v2375, %v2380
        %v2385 = vrsqrt.pop %v2314
        %v2386 = vmul.f32 %v2385, %v2314
        %v2387 = vmul.f32 %v2386, %v2385
        %v2388 = vmul.f32 0.5, %v2387
        %v2389 = vsub.f32 1.5, %v2388
        %v2390 = vmul.f32 %v2385, %v2389
        %vm2391 = vweird.f32 %v2314
        %vm2392 = vweird.f32 %v2385
        %vm2393 = vmor %vm2391, %vm2392
        %v2394 = vsel %vm2393, %v2385, %v2390
        %v2395 = vmul.f32 %v2307, %v2324
        %v2396 = vmul.f32 %v2308, %v2334
        %v2397 = vmul.f32 %v2309, %v2344
        %v2398 = vmul.f32 %v2310, %v2354
        %v2399 = vmul.f32 %v2311, %v2364
        %v2400 = vmul.f32 %v2312, %v2374
        %v2401 = vmul.f32 %v2313, %v2384
        %v2402 = vmul.f32 %v2314, %v2394
        %v2403 = vmul.f32 %v2267, %v2395
        %v2404 = vmul.f32 %v2268, %v2396
        %v2405 = vmul.f32 %v2269, %v2397
        %v2406 = vmul.f32 %v2270, %v2398
        %v2407 = vmul.f32 %v2271, %v2399
        %v2408 = vmul.f32 %v2272, %v2400
        %v2409 = vmul.f32 %v2273, %v2401
        %v2410 = vmul.f32 %v2274, %v2402
        %v2411 = vtanh.pop %v2403
        %v2412 = vtanh.pop %v2404
        %v2413 = vtanh.pop %v2405
        %v2414 = vtanh.pop %v2406
        %v2415 = vtanh.pop %v2407
        %v2416 = vtanh.pop %v2408
        %v2417 = vtanh.pop %v2409
        %v2418 = vtanh.pop %v2410
        %v2419 = vmin.f32 %v2411, 0.996
        %v2420 = vmin.f32 %v2412, 0.996
        %v2421 = vmin.f32 %v2413, 0.996
        %v2422 = vmin.f32 %v2414, 0.996
        %v2423 = vmin.f32 %v2415, 0.996
        %v2424 = vmin.f32 %v2416, 0.996
        %v2425 = vmin.f32 %v2417, 0.996
        %v2426 = vmin.f32 %v2418, 0.996
        %v2427 = vmul.f32 %v2419, %v2324
        %v2428 = vmul.f32 %v2420, %v2334
        %v2429 = vmul.f32 %v2421, %v2344
        %v2430 = vmul.f32 %v2422, %v2354
        %v2431 = vmul.f32 %v2423, %v2364
        %v2432 = vmul.f32 %v2424, %v2374
        %v2433 = vmul.f32 %v2425, %v2384
        %v2434 = vmul.f32 %v2426, %v2394
        %v2435 = vmul.f32 %v2427, %v2275
        %v2436 = vmul.f32 %v2428, %v2276
        %v2437 = vmul.f32 %v2429, %v2277
        %v2438 = vmul.f32 %v2430, %v2278
        %v2439 = vmul.f32 %v2431, %v2279
        %v2440 = vmul.f32 %v2432, %v2280
        %v2441 = vmul.f32 %v2433, %v2281
        %v2442 = vmul.f32 %v2434, %v2282
        %2443 = vst [vmem:[%s248] sm:$0xff] %v2435
        %2444 = vst [vmem:[%s248 + $0x8] sm:$0xff] %v2436
        %2445 = vst [vmem:[%s248 + $0x10] sm:$0xff] %v2437
        %2446 = vst [vmem:[%s248 + $0x18] sm:$0xff] %v2438
        %2447 = vst [vmem:[%s248 + $0x20] sm:$0xff] %v2439
        %2448 = vst [vmem:[%s248 + $0x28] sm:$0xff] %v2440
        %2449 = vst [vmem:[%s248 + $0x30] sm:$0xff] %v2441
        %2450 = vst [vmem:[%s248 + $0x38] sm:$0xff] %v2442
        %s2451 = sand.u32 %s104, 1
        %s2452 = scalar_lea.sflag [#allocation4], %s2451
        %s2453 = sand.u32 %s104, 1
        %s2454 = smul.addr %s2453, 64
        %s2455 = scalar_lea.vmem [#allocation8], %s2454
        // Predicated region
        $region45: #{tpu_custom_call.1} parent=31 // pred_check
          %p2456 = pneg %p114
        $region46: #{tpu_custom_call.1} parent=31 // pred_check_branch
          %2458 = sbr.rel (%p2456) target = $region48
        $region47: #{tpu_custom_call.1} parent=31 // pred_region
          %2460 = vsyncadd %s2452, 0
          %s2461 = smul.addr %s23, 8
          %s2462 = smul.addr %s2461, 8
          %s2463 = scalar_lea.hbm %s3, %s2462
          %s2464 = sshll.u32 %s2455, 4
          %s2465 = int_to_ptr.vmem [resolvable:$true] %s2464
          %s2466 = sshll.u32 %s2463, 4
          %s2467 = int_to_ptr.hbm [resolvable:$true] %s2466
          %2472 = dma.vmem_to_hbm [thread:$0]  %s2465, 1024, %s2467, %s2452, 128, 128, 8
        $region48: #{tpu_custom_call.1} parent=31 // pred_fallthru
          _
      $region32: #{tpu_custom_call.1} parent=5 // pred_fallthru
        _
      %p2473 = scmp.le.s32.totalorder 2, %s18
      // Predicated region
      $region49: #{tpu_custom_call.1} parent=5 // pred_check
        %p2474 = pneg %p2473
      $region50: #{tpu_custom_call.1} parent=5 // pred_check_branch
        %2476 = sbr.rel (%p2474) target = $region52
      $region51: #{tpu_custom_call.1} parent=5 // pred_region
        %s2477 = ssub.s32 %s18, 2
        // Predicated region
        $region53: #{tpu_custom_call.1} parent=51 // pred_check
          %p2478 = pneg %p120
        $region54: #{tpu_custom_call.1} parent=51 // pred_check_branch
          %2480 = sbr.rel (%p2478) target = $region56
        $region55: #{tpu_custom_call.1} parent=51 // pred_region
          %s2481 = sand.u32 %s105, 1
          %s2482 = scalar_lea.sflag [#allocation4], %s2481
          %s2483 = sand.u32 %s105, 1
          %s2484 = smul.addr %s2483, 64
          %s2485 = scalar_lea.vmem [#allocation8], %s2484
          %2487 = dma.done %s2482, 1024
        $region56: #{tpu_custom_call.1} parent=51 // pred_fallthru
          _
      $region52: #{tpu_custom_call.1} parent=5 // pred_fallthru
        _
    $region6: #{tpu_custom_call.1} parent=1 // loop_footer
      %s22 = sadd.s32 1, %s18
    $region7: #{tpu_custom_call.1} parent=1 // loop_footer_branch
      %17 = sbr.rel target = $region3
    $region8: #{tpu_custom_call.1} parent=1 // loop_exit
      _
    %2488 = vsyncpa [#allocation3], 1
    %s2489 = scalar_lea.sflag [#allocation3], 1
    %2490 = vsyncpa %s2489, 1
    %2491 = vsyncpa [#allocation6], 1
    %s2492 = scalar_lea.sflag [#allocation6], 1
    %2493 = vsyncpa %s2492, 1
    %2494 = vsyncpa [#allocation4], 1
    %s2495 = scalar_lea.sflag [#allocation4], 1
    %2496 = vsyncpa %s2495, 1

</llo_original>
